<compile_context>
chip_gen: v7x
topology: tpu7x:2x2x1
jax: 0.10.0
libtpu: 0.0.40
codegen_flags: <defaults>
</compile_context>

<pallas_src>
import functools

import jax
import jax.numpy as jnp
import numpy as np
from jax.experimental import pallas as pl
from jax.experimental.pallas import tpu as pltpu


def _round_up(x, m):
    return ((x + m - 1) // m) * m


def _pick_batch_tile(batch, block_b):
    """Largest sublane-aligned divisor of `batch` <= block_b, preferring >= 2 tiles
    (v7x has two TensorCores; a grid of 1 leaves one idle)."""
    cap = min(block_b, batch)
    if batch >= 16 and batch % 2 == 0:
        cap = min(cap, batch // 2)
    cand = (cap // 8) * 8
    while cand >= 8:
        if batch % cand == 0:
            return cand
        cand -= 8
    return batch


def _linear_projector_kernel(
    xf_ref,      # (TB, Dfp)   cdt   dense node features (lane-padded Df)
    ids_ref,     # (TB, 1)     int32 categorical node feature
    tok_ref,     # (TB, L)     int32 bag-of-words token ids
    invlen_ref,  # (TB, 1)     f32   precomputed 1/length
    wcat_ref,    # (Kcat, Hp)  cdt   [ew@wp.T ; eid ; wf.T] K-concatenated weights
    bias_ref,    # (1, Hp)     f32   pre-summed bias (bf + bp)
    out_ref,     # (TB, Hp)    f32   summed projections
    *,
    vp,          # padded word-vocab size   (multiple of 128)
    nvp,         # padded id-vocab size     (multiple of 128)
):
    tb, seq_len = tok_ref.shape
    cdt = wcat_ref.dtype

    # ---- BoW token counts: int32 accumulation over L static (unrolled) compares,
    # a single int->float convert, averaging folded in via precomputed 1/len.
    iota_v = jax.lax.broadcasted_iota(jnp.int32, (tb, vp), 1)
    cnt = (tok_ref[:, 0:1] == iota_v).astype(jnp.int32)
    for l in range(1, seq_len):
        cnt = cnt + (tok_ref[:, l:l + 1] == iota_v).astype(jnp.int32)
    counts_avg = (cnt * invlen_ref[...]).astype(cdt)                 # (TB, Vp)

    # ---- nn.Embedding(id) as a one-hot segment of the fused matmul.
    iota_id = jax.lax.broadcasted_iota(jnp.int32, (tb, nvp), 1)
    onehot_id = (ids_ref[...] == iota_id).astype(cdt)                # (TB, NVp)

    # ---- single fused projection: X_cat @ W_cat (all concat offsets 128-aligned).
    x_cat = jnp.concatenate([counts_avg, onehot_id, xf_ref[...]], axis=1)
    acc = jnp.dot(x_cat, wcat_ref[...], preferred_element_type=jnp.float32)
    out_ref[...] = acc + bias_ref[...]


def prepare_params(params, *, use_bf16=True):
    """One-time weight preparation (hoisted out of the per-call path)."""
    H, Df = params["wf"].shape
    V, Dw = params["eword"].shape
    NV = params["eid"].shape[0]

    LANE, SUB = 128, 8
    Hp = _round_up(H, LANE)
    Vp = _round_up(V, LANE)
    NVp = _round_up(NV, LANE)
    Dfp = _round_up(Df, SUB)
    cdt = jnp.bfloat16 if use_bf16 else jnp.float32
    pad_h = (0, Hp - H)

    # Fold the BoW projection into the word table:  (counts/len) @ (eword @ wp.T).
    ew_proj = jnp.pad(params["eword"], ((0, Vp - V), (0, 0))) @ \
        jnp.pad(params["wp"].T, ((0, 0), pad_h))                     # (Vp, Hp)
    eid = jnp.pad(params["eid"], ((0, NVp - NV), pad_h))             # (NVp, Hp)
    wf_t = jnp.pad(params["wf"].T, ((0, Dfp - Df), pad_h))           # (Dfp, Hp)
    wcat = jnp.concatenate([ew_proj, eid, wf_t], axis=0).astype(cdt)  # (Kcat, Hp)
    bias = jnp.pad((params["bf"] + params["bp"]).reshape(1, H),
                   ((0, 0), pad_h)).astype(jnp.float32)              # (1, Hp)

    return {
        "wcat": wcat,
        "bias": bias,
        "dims": dict(H=H, Hp=Hp, Df=Df, Dfp=Dfp, V=V, Vp=Vp, NV=NV, NVp=NVp, Dw=Dw),
    }


def linear_projector(ndata, prepped, *, block_b=256):
    """Per-call wrapper: input pad/cast glue + one pipelined Pallas kernel."""
    d = prepped["dims"]
    wcat, bias = prepped["wcat"], prepped["bias"]
    cdt = wcat.dtype
    Hp, Dfp, Vp, NVp = d["Hp"], d["Dfp"], d["Vp"], d["NVp"]

    feat = ndata["feat"].astype(jnp.float32)
    B, Df = feat.shape
    xf = jnp.pad(feat, ((0, 0), (0, Dfp - Df))).astype(cdt)
    ids = ndata["id"].astype(jnp.int32)
    # match JAX/py negative-index semantics for padding_idx=-1 lookups
    ids = jnp.where(ids < 0, ids + d["NV"], ids).reshape(-1, 1)
    tokens = ndata["title"].astype(jnp.int32)
    # zero lengths would yield inf (the PyTorch reference shares this behaviour)
    invlen = (1.0 / ndata["title__len"].astype(jnp.float32)).reshape(-1, 1)
    L = tokens.shape[1]

    TB = _pick_batch_tile(B, block_b)
    grid = (B // TB,)
    Kcat = wcat.shape[0]
    itemsize = jnp.dtype(cdt).itemsize

    # VMEM budget: per-tile buffers are double-buffered; resident slab budgeted 2x
    # (constant-index operands still get 2 pipeline buffers by default).
    tile_bytes = TB * (Dfp * itemsize + 4 + L * 4 + 4 + Hp * 4)
    resident_bytes = wcat.size * itemsize + bias.size * 4
    vmem_limit = int(min(64 << 20,
                         max(16 << 20, 2 * tile_bytes + 2 * resident_bytes + (2 << 20))))

    flops = int(2 * B * Kcat * Hp + B * L * Vp + 2 * B * Vp + B * NVp)
    bytes_accessed = int(xf.size * itemsize + (ids.size + tokens.size + invlen.size) * 4
                         + wcat.size * itemsize + bias.size * 4 + B * Hp * 4)

    kernel = functools.partial(_linear_projector_kernel, vp=Vp, nvp=NVp)

    in_specs = [
        pl.BlockSpec((TB, Dfp), lambda i: (i, 0)),   # feat
        pl.BlockSpec((TB, 1), lambda i: (i, 0)),     # ids
        pl.BlockSpec((TB, L), lambda i: (i, 0)),     # tokens
        pl.BlockSpec((TB, 1), lambda i: (i, 0)),     # 1/len
        pl.BlockSpec((Kcat, Hp), lambda i: (0, 0)),  # W_cat  (VMEM-resident)
        pl.BlockSpec((1, Hp), lambda i: (0, 0)),     # bias   (VMEM-resident)
    ]
    out_specs = pl.BlockSpec((TB, Hp), lambda i: (i, 0))

    out_padded = pl.pallas_call(
        kernel,
        out_shape=jax.ShapeDtypeStruct((B, Hp), jnp.float32),
        grid=grid,
        in_specs=in_specs,
        out_specs=out_specs,
        compiler_params=pltpu.CompilerParams(
            dimension_semantics=("parallel",),
            vmem_limit_bytes=vmem_limit),
        cost_estimate=pl.CostEstimate(flops=flops, transcendentals=0,
                                      bytes_accessed=bytes_accessed),
    )(xf, ids, tokens, invlen, wcat, bias)

    # Skip the slice entirely when H is already lane-aligned (demo uses H=128).
    return out_padded if Hp == d["H"] else out_padded[:, :d["H"]]


# ----------------------- deterministic parameter init -----------------------

def _xavier_uniform(key, shape):
    fan_out, fan_in = shape
    bound = float(np.sqrt(6.0 / (fan_in + fan_out)))
    return jax.random.uniform(key, shape, jnp.float32, -bound, bound)


def init_params(key, *, dense_dim, hidden, num_ids, vocab, word_dim, pad_idx):
    k = jax.random.split(key, 5)
    return {
        # nn.Linear(dense_dim, hidden): xavier weight, zero bias
        "wf": _xavier_uniform(k[0], (hidden, dense_dim)),
        "bf": jnp.zeros((hidden,), jnp.float32),
        # nn.Embedding(num_ids + 2, hidden, padding_idx=-1): xavier applied AFTER
        # construction in the PyTorch module, so the padding row is xavier-valued.
        "eid": _xavier_uniform(k[1], (num_ids + 2, hidden)),
        # pretrained word vectors (frozen in the PyTorch module); pad row = 0
        "eword": _xavier_uniform(k[2], (vocab, word_dim)).at[pad_idx].set(0.0),
        # BagOfWordsPretrained projection: xavier weight, zero bias
        "wp": _xavier_uniform(k[3], (hidden, word_dim)),
        "bp": jnp.zeros((hidden,), jnp.float32),
    }


def reference(ndata, params):
    """Pure-JAX reference mirroring the PyTorch forward."""
    feat_proj = ndata["feat"] @ params["wf"].T + params["bf"]
    id_proj = params["eid"][ndata["id"]]
    emb = params["eword"][ndata["title"]]                        # (B, L, Dw)
    bow = emb.sum(1) / ndata["title__len"].astype(jnp.float32)[:, None]
    text_proj = bow @ params["wp"].T + params["bp"]
    return feat_proj + id_proj + text_proj


if __name__ == "__main__":
    # H = 128 (multiple of 128) -> full-lane output stores, no post-slice;
    # B = 256 -> two 128-row batch tiles (fills the MXU M dim, shards over v7x TCs).
    B, Df, H = 256, 12, 128
    L, Dw = 6, 16
    NUM_IDS, VOCAB, PAD = 16, 40, 0

    key = jax.random.PRNGKey(0)
    kp, kx, kid, ktok, klen = jax.random.split(key, 5)

    params = init_params(kp, dense_dim=Df, hidden=H, num_ids=NUM_IDS,
                         vocab=VOCAB, word_dim=Dw, pad_idx=PAD)

    feat = jax.random.normal(kx, (B, Df), jnp.float32)
    ids = jax.random.randint(kid, (B,), 0, NUM_IDS, jnp.int32)
    lengths = jax.random.randint(klen, (B,), 1, L + 1, jnp.int32)   # lengths >= 1
    tokens = jax.random.randint(ktok, (B, L), 1, VOCAB, jnp.int32)
    # pad tokens beyond each sequence's length with the (zero-vector) pad index
    pos = jnp.arange(L)[None, :]
    tokens = jnp.where(pos < lengths[:, None], tokens, PAD)

    ndata = {"feat": feat, "id": ids, "title": tokens, "title__len": lengths}
    ref = jax.block_until_ready(reference(ndata, params))

    # f32 operands: strict check (v5e-friendly path).
    prepped_f32 = prepare_params(params, use_bf16=False)
    out_f32 = jax.block_until_ready(linear_projector(ndata, prepped_f32))
    np.testing.assert_allclose(np.asarray(out_f32), np.asarray(ref),
                               rtol=1e-4, atol=1e-5)

    # bf16 operands (f32 accumulation): MXU-native on v6e/v7x, relaxed tolerance.
    prepped_bf16 = prepare_params(params, use_bf16=True)
    out_bf16 = jax.block_until_ready(linear_projector(ndata, prepped_bf16))
    np.testing.assert_allclose(np.asarray(out_bf16), np.asarray(ref),
                               rtol=5e-2, atol=5e-2)

    print("KERNEL_OK")
</pallas_src>

<mosaic_0001>
module attributes {stable_mosaic.version = 11 : i64} {
  func.func @_linear_projector_kernel(%arg0: i32, %arg1: memref<128x16xf32, #tpu.memory_space<vmem>>, %arg2: memref<128x1xi32, #tpu.memory_space<vmem>>, %arg3: memref<128x6xi32, #tpu.memory_space<vmem>>, %arg4: memref<128x1xf32, #tpu.memory_space<vmem>>, %arg5: memref<272x128xf32, #tpu.memory_space<vmem>>, %arg6: memref<1x128xf32, #tpu.memory_space<vmem>>, %arg7: memref<128x128xf32, #tpu.memory_space<vmem>>) attributes {dimension_semantics = [#tpu.dimension_semantics<parallel>], iteration_bounds = array<i64: 2>, scalar_prefetch = 0 : i64, scratch_operands = 0 : i64, tpu.core_type = #tpu.core_type<tc>, window_params = [{transform_indices = @transform_0, window_bounds = array<i64: 128, 16>}, {transform_indices = @transform_1, window_bounds = array<i64: 128, 1>}, {transform_indices = @transform_2, window_bounds = array<i64: 128, 6>}, {transform_indices = @transform_3, window_bounds = array<i64: 128, 1>}, {pipeline_mode = #tpu.pipeline_mode<synchronous>, transform_indices = @transform_4, window_bounds = array<i64: 272, 128>}, {pipeline_mode = #tpu.pipeline_mode<synchronous>, transform_indices = @transform_5, window_bounds = array<i64: 1, 128>}, {transform_indices = @transform_6, window_bounds = array<i64: 128, 128>}]} {
    %0 = tpu.iota {dimensions = array<i32: 1>} : vector<128x128xi32>
    %c0 = arith.constant 0 : index
    %c0_0 = arith.constant 0 : index
    %1 = vector.load %arg3[%c0, %c0_0] : memref<128x6xi32, #tpu.memory_space<vmem>>, vector<128x1xi32>
    %2 = vector.broadcast %1 : vector<128x1xi32> to vector<128x128xi32>
    %3 = arith.cmpi eq, %2, %0 : vector<128x128xi32>
    %4 = arith.extui %3 : vector<128x128xi1> to vector<128x128xi32>
    %c0_1 = arith.constant 0 : index
    %c1 = arith.constant 1 : index
    %5 = vector.load %arg3[%c0_1, %c1] : memref<128x6xi32, #tpu.memory_space<vmem>>, vector<128x1xi32>
    %6 = vector.broadcast %5 : vector<128x1xi32> to vector<128x128xi32>
    %7 = arith.cmpi eq, %6, %0 : vector<128x128xi32>
    %8 = arith.extui %7 : vector<128x128xi1> to vector<128x128xi32>
    %9 = arith.addi %4, %8 : vector<128x128xi32>
    %c0_2 = arith.constant 0 : index
    %c2 = arith.constant 2 : index
    %10 = vector.load %arg3[%c0_2, %c2] : memref<128x6xi32, #tpu.memory_space<vmem>>, vector<128x1xi32>
    %11 = vector.broadcast %10 : vector<128x1xi32> to vector<128x128xi32>
    %12 = arith.cmpi eq, %11, %0 : vector<128x128xi32>
    %13 = arith.extui %12 : vector<128x128xi1> to vector<128x128xi32>
    %14 = arith.addi %9, %13 : vector<128x128xi32>
    %c0_3 = arith.constant 0 : index
    %c3 = arith.constant 3 : index
    %15 = vector.load %arg3[%c0_3, %c3] : memref<128x6xi32, #tpu.memory_space<vmem>>, vector<128x1xi32>
    %16 = vector.broadcast %15 : vector<128x1xi32> to vector<128x128xi32>
    %17 = arith.cmpi eq, %16, %0 : vector<128x128xi32>
    %18 = arith.extui %17 : vector<128x128xi1> to vector<128x128xi32>
    %19 = arith.addi %14, %18 : vector<128x128xi32>
    %c0_4 = arith.constant 0 : index
    %c4 = arith.constant 4 : index
    %20 = vector.load %arg3[%c0_4, %c4] : memref<128x6xi32, #tpu.memory_space<vmem>>, vector<128x1xi32>
    %21 = vector.broadcast %20 : vector<128x1xi32> to vector<128x128xi32>
    %22 = arith.cmpi eq, %21, %0 : vector<128x128xi32>
    %23 = arith.extui %22 : vector<128x128xi1> to vector<128x128xi32>
    %24 = arith.addi %19, %23 : vector<128x128xi32>
    %c0_5 = arith.constant 0 : index
    %c5 = arith.constant 5 : index
    %25 = vector.load %arg3[%c0_5, %c5] : memref<128x6xi32, #tpu.memory_space<vmem>>, vector<128x1xi32>
    %26 = vector.broadcast %25 : vector<128x1xi32> to vector<128x128xi32>
    %27 = arith.cmpi eq, %26, %0 : vector<128x128xi32>
    %28 = arith.extui %27 : vector<128x128xi1> to vector<128x128xi32>
    %29 = arith.addi %24, %28 : vector<128x128xi32>
    %c0_6 = arith.constant 0 : index
    %c0_7 = arith.constant 0 : index
    %30 = vector.load %arg4[%c0_6, %c0_7] : memref<128x1xf32, #tpu.memory_space<vmem>>, vector<128x1xf32>
    %31 = arith.sitofp %29 : vector<128x128xi32> to vector<128x128xf32>
    %32 = vector.broadcast %30 : vector<128x1xf32> to vector<128x128xf32>
    %33 = arith.mulf %31, %32 : vector<128x128xf32>
    %34 = tpu.iota {dimensions = array<i32: 1>} : vector<128x128xi32>
    %c0_8 = arith.constant 0 : index
    %c0_9 = arith.constant 0 : index
    %35 = vector.load %arg2[%c0_8, %c0_9] : memref<128x1xi32, #tpu.memory_space<vmem>>, vector<128x1xi32>
    %36 = vector.broadcast %35 : vector<128x1xi32> to vector<128x128xi32>
    %37 = arith.cmpi eq, %36, %34 : vector<128x128xi32>
    %38 = arith.extui %37 : vector<128x128xi1> to vector<128x128xi32>
    %39 = arith.sitofp %38 : vector<128x128xi32> to vector<128x128xf32>
    %c0_10 = arith.constant 0 : index
    %c0_11 = arith.constant 0 : index
    %40 = vector.load %arg1[%c0_10, %c0_11] : memref<128x16xf32, #tpu.memory_space<vmem>>, vector<128x16xf32>
    %41 = tpu.concatenate %33, %39, %40 in 1 : vector<128x128xf32>, vector<128x128xf32>, vector<128x16xf32> -> vector<128x272xf32>
    %c0_12 = arith.constant 0 : index
    %c0_13 = arith.constant 0 : index
    %42 = vector.load %arg5[%c0_12, %c0_13] : memref<272x128xf32, #tpu.memory_space<vmem>>, vector<272x128xf32>
    %cst = arith.constant dense<0.000000e+00> : vector<128x128xf32>
    %43 = tpu.matmul %41, %42, %cst {dimension_numbers = #tpu.dot_dimension_numbers<[1], [0], [0], [1], [0, 0, 1, 1], [], []>} : vector<128x272xf32>, vector<272x128xf32>, vector<128x128xf32> -> vector<128x128xf32>
    %c0_14 = arith.constant 0 : index
    %c0_15 = arith.constant 0 : index
    %44 = vector.load %arg6[%c0_14, %c0_15] : memref<1x128xf32, #tpu.memory_space<vmem>>, vector<1x128xf32>
    %45 = vector.broadcast %44 : vector<1x128xf32> to vector<128x128xf32>
    %46 = arith.addf %43, %45 : vector<128x128xf32>
    %c0_16 = arith.constant 0 : index
    %c0_17 = arith.constant 0 : index
    %47 = vector.load %arg7[%c0_16, %c0_17] : memref<128x128xf32, #tpu.memory_space<vmem>>, vector<128x128xf32>
    tpu.vector_store %arg7[%c0_16, %c0_17], %46 {strides = array<i32>} : memref<128x128xf32, #tpu.memory_space<vmem>>, vector<128x128xf32>,
    return
  }
  func.func @transform_0(%arg0: i32) -> (i32, i32) {
    %c0_i32 = arith.constant 0 : i32
    %c0_i32_0 = arith.constant 0 : i32
    return %arg0, %c0_i32 : i32, i32
  }
  func.func @transform_1(%arg0: i32) -> (i32, i32) {
    %c0_i32 = arith.constant 0 : i32
    %c0_i32_0 = arith.constant 0 : i32
    return %arg0, %c0_i32 : i32, i32
  }
  func.func @transform_2(%arg0: i32) -> (i32, i32) {
    %c0_i32 = arith.constant 0 : i32
    %c0_i32_0 = arith.constant 0 : i32
    return %arg0, %c0_i32 : i32, i32
  }
  func.func @transform_3(%arg0: i32) -> (i32, i32) {
    %c0_i32 = arith.constant 0 : i32
    %c0_i32_0 = arith.constant 0 : i32
    return %arg0, %c0_i32 : i32, i32
  }
  func.func @transform_4(%arg0: i32) -> (i32, i32) {
    %c0_i32 = arith.constant 0 : i32
    %c0_i32_0 = arith.constant 0 : i32
    %c0_i32_1 = arith.constant 0 : i32
    return %c0_i32, %c0_i32_0 : i32, i32
  }
  func.func @transform_5(%arg0: i32) -> (i32, i32) {
    %c0_i32 = arith.constant 0 : i32
    %c0_i32_0 = arith.constant 0 : i32
    %c0_i32_1 = arith.constant 0 : i32
    return %c0_i32, %c0_i32_0 : i32, i32
  }
  func.func @transform_6(%arg0: i32) -> (i32, i32) {
    %c0_i32 = arith.constant 0 : i32
    %c0_i32_0 = arith.constant 0 : i32
    return %arg0, %c0_i32 : i32, i32
  }
}

</mosaic_0001>

<llo_original>
// kernel: tpu_custom_call.1
$region0: #{tpu_custom_call.1}
  #allocation0 [shape = 'u32[]', space=smem, size = 0x4, offset = 0x4, fixed_abs, tag = 'smem constant byte address 0x4 - core index']
  #allocation1 [shape = 'u32[144,128]{1,0:T(1,128)}', space=vmem, size = 0x12000, scoped, tag = 'internal scratch']
  %s0 = inlined_call_operand.vmem [shape: f32[256,16], index: 0, kind: input, shape index: {}]
  %s1 = inlined_call_operand.vmem [shape: s32[256,1], index: 1, kind: input, shape index: {}]
  %s2 = inlined_call_operand.vmem [shape: s32[256,6], index: 2, kind: input, shape index: {}]
  %s3 = inlined_call_operand.vmem [shape: f32[256,1], index: 3, kind: input, shape index: {}]
  %s4 = inlined_call_operand.vmem [shape: f32[272,128], index: 4, kind: input, shape index: {}]
  %s5 = inlined_call_operand.vmem [shape: f32[1,128], index: 5, kind: input, shape index: {}]
  %s6 = inlined_call_operand.hbm [shape: f32[256,128], index: 6, kind: output, shape index: {}]
  %s7 = sld [smem:[#allocation0]]
  $region57: #{tpu_custom_call.1} parent=0
    _
  %s9 = ssub.s32 1, %s7
  %s10 = scalar_select 0, %s9, %s7
  $region1: #{tpu_custom_call.1} parent=0
    #allocation2 [shape = 'u8[131072]{0}', space=vmem, size = 0x20000, scoped, tag = 'output window, operand 0']
    #allocation3 [shape = 's32[2]{0}', space=sflag, size = 0x8, scoped, tag = 'scoped memory for tpu_custom_call.1']
    %11 = vsyncpa [#allocation3], 0
    %s12 = scalar_lea.sflag [#allocation3], 1
    %13 = vsyncpa %s12, 0
    loop: start=0, step=1, limit=4
    $region2: #{tpu_custom_call.1} parent=1 // loop_pre_header
      _
    $region3: #{tpu_custom_call.1} parent=1 // loop_header
      %s15 = sphi 0, %s19
      %p16 = scmp.ge.s32.totalorder %s15, 4
      %s25 = sphi 0, %s27
      %s28 = sphi 0, %s25
      %s29 = sphi 0, %s28
      %s45 = sphi 0, %s29
      %s51 = sphi 0, %s53
      %s54 = sphi 0, %s51
      %s55 = sphi 0, %s54
      %s71 = sphi 0, %s55
      %s77 = sphi 0, %s79
      %s80 = sphi 0, %s77
      %s81 = sphi 0, %s80
      %s97 = sphi 0, %s81
      %s103 = sphi 0, %s105
      %s106 = sphi 0, %s103
      %s107 = sphi 0, %s106
      %s123 = sphi 0, %s107
      %s127 = sphi 0, %s127
      %s129 = sphi 0, %s127
      %s130 = sphi 0, %s129
      %s144 = sphi 0, %s130
      %s148 = sphi 0, %s148
      %s150 = sphi 0, %s148
      %s151 = sphi 0, %s150
      %s165 = sphi 0, %s151
      %s171 = sphi 0, %s173
      %s174 = sphi 0, %s171
      %s175 = sphi 0, %s174
      %s191 = sphi 0, %s175
    $region4: #{tpu_custom_call.1} parent=1 // loop_header_branch
      %18 = sbr.rel (%p16) target = $region8
    $region5: #{tpu_custom_call.1} parent=1 // loop_body
      %s20 = ssub.s32 %s15, 1
      %s21 = ssub.s32 %s15, 2
      %s22 = sadd.s32 %s15, 1
      %s23 = ssub.s32 %s15, %s22
      %p24 = scmp.eq.s32.totalorder %s23, 0
      %s26 = sadd.s32 %s25, 1
      %s27 = scalar_select %p24, %s25, %s26
      %p30 = pneg %p24
      %p31 = scmp.eq.s32.totalorder %s15, 1
      %p32 = por %p30, %p31
      %p33 = scmp.ne.s32.totalorder %s25, %s28
      %p34 = scmp.eq.s32.totalorder %s15, 0
      %p35 = por %p33, %p34
      %p36 = scmp.ne.s32.totalorder %s25, %s28
      %p37 = scmp.eq.s32.totalorder %s20, 1
      %p38 = por %p36, %p37
      %p39 = scmp.ne.s32.totalorder %s28, %s29
      %p40 = scmp.eq.s32.totalorder %s20, 0
      %p41 = por %p39, %p40
      %p42 = scmp.ne.s32.totalorder %s28, %s29
      %p43 = scmp.eq.s32.totalorder %s21, 1
      %p44 = por %p42, %p43
      %p46 = scmp.ne.s32.totalorder %s29, %s45
      %p47 = scmp.eq.s32.totalorder %s21, 0
      %p48 = por %p46, %p47
      %s49 = ssub.s32 %s15, %s22
      %p50 = scmp.eq.s32.totalorder %s49, 0
      %s52 = sadd.s32 %s51, 1
      %s53 = scalar_select %p50, %s51, %s52
      %p56 = pneg %p50
      %p57 = scmp.eq.s32.totalorder %s15, 1
      %p58 = por %p56, %p57
      %p59 = scmp.ne.s32.totalorder %s51, %s54
      %p60 = scmp.eq.s32.totalorder %s15, 0
      %p61 = por %p59, %p60
      %p62 = scmp.ne.s32.totalorder %s51, %s54
      %p63 = scmp.eq.s32.totalorder %s20, 1
      %p64 = por %p62, %p63
      %p65 = scmp.ne.s32.totalorder %s54, %s55
      %p66 = scmp.eq.s32.totalorder %s20, 0
      %p67 = por %p65, %p66
      %p68 = scmp.ne.s32.totalorder %s54, %s55
      %p69 = scmp.eq.s32.totalorder %s21, 1
      %p70 = por %p68, %p69
      %p72 = scmp.ne.s32.totalorder %s55, %s71
      %p73 = scmp.eq.s32.totalorder %s21, 0
      %p74 = por %p72, %p73
      %s75 = ssub.s32 %s15, %s22
      %p76 = scmp.eq.s32.totalorder %s75, 0
      %s78 = sadd.s32 %s77, 1
      %s79 = scalar_select %p76, %s77, %s78
      %p82 = pneg %p76
      %p83 = scmp.eq.s32.totalorder %s15, 1
      %p84 = por %p82, %p83
      %p85 = scmp.ne.s32.totalorder %s77, %s80
      %p86 = scmp.eq.s32.totalorder %s15, 0
      %p87 = por %p85, %p86
      %p88 = scmp.ne.s32.totalorder %s77, %s80
      %p89 = scmp.eq.s32.totalorder %s20, 1
      %p90 = por %p88, %p89
      %p91 = scmp.ne.s32.totalorder %s80, %s81
      %p92 = scmp.eq.s32.totalorder %s20, 0
      %p93 = por %p91, %p92
      %p94 = scmp.ne.s32.totalorder %s80, %s81
      %p95 = scmp.eq.s32.totalorder %s21, 1
      %p96 = por %p94, %p95
      %p98 = scmp.ne.s32.totalorder %s81, %s97
      %p99 = scmp.eq.s32.totalorder %s21, 0
      %p100 = por %p98, %p99
      %s101 = ssub.s32 %s15, %s22
      %p102 = scmp.eq.s32.totalorder %s101, 0
      %s104 = sadd.s32 %s103, 1
      %s105 = scalar_select %p102, %s103, %s104
      %p108 = pneg %p102
      %p109 = scmp.eq.s32.totalorder %s15, 1
      %p110 = por %p108, %p109
      %p111 = scmp.ne.s32.totalorder %s103, %s106
      %p112 = scmp.eq.s32.totalorder %s15, 0
      %p113 = por %p111, %p112
      %p114 = scmp.ne.s32.totalorder %s103, %s106
      %p115 = scmp.eq.s32.totalorder %s20, 1
      %p116 = por %p114, %p115
      %p117 = scmp.ne.s32.totalorder %s106, %s107
      %p118 = scmp.eq.s32.totalorder %s20, 0
      %p119 = por %p117, %p118
      %p120 = scmp.ne.s32.totalorder %s106, %s107
      %p121 = scmp.eq.s32.totalorder %s21, 1
      %p122 = por %p120, %p121
      %p124 = scmp.ne.s32.totalorder %s107, %s123
      %p125 = scmp.eq.s32.totalorder %s21, 0
      %p126 = por %p124, %p125
      %s128 = sadd.s32 %s127, 1
      %p131 = scmp.eq.s32.totalorder %s15, 1
      %p132 = scmp.ne.s32.totalorder %s127, %s129
      %p133 = scmp.eq.s32.totalorder %s15, 0
      %p134 = por %p132, %p133
      %p135 = scmp.ne.s32.totalorder %s127, %s129
      %p136 = scmp.eq.s32.totalorder %s20, 1
      %p137 = por %p135, %p136
      %p138 = scmp.ne.s32.totalorder %s129, %s130
      %p139 = scmp.eq.s32.totalorder %s20, 0
      %p140 = por %p138, %p139
      %p141 = scmp.ne.s32.totalorder %s129, %s130
      %p142 = scmp.eq.s32.totalorder %s21, 1
      %p143 = por %p141, %p142
      %p145 = scmp.ne.s32.totalorder %s130, %s144
      %p146 = scmp.eq.s32.totalorder %s21, 0
      %p147 = por %p145, %p146
      %s149 = sadd.s32 %s148, 1
      %p152 = scmp.eq.s32.totalorder %s15, 1
      %p153 = scmp.ne.s32.totalorder %s148, %s150
      %p154 = scmp.eq.s32.totalorder %s15, 0
      %p155 = por %p153, %p154
      %p156 = scmp.ne.s32.totalorder %s148, %s150
      %p157 = scmp.eq.s32.totalorder %s20, 1
      %p158 = por %p156, %p157
      %p159 = scmp.ne.s32.totalorder %s150, %s151
      %p160 = scmp.eq.s32.totalorder %s20, 0
      %p161 = por %p159, %p160
      %p162 = scmp.ne.s32.totalorder %s150, %s151
      %p163 = scmp.eq.s32.totalorder %s21, 1
      %p164 = por %p162, %p163
      %p166 = scmp.ne.s32.totalorder %s151, %s165
      %p167 = scmp.eq.s32.totalorder %s21, 0
      %p168 = por %p166, %p167
      %s169 = ssub.s32 %s15, %s22
      %p170 = scmp.eq.s32.totalorder %s169, 0
      %s172 = sadd.s32 %s171, 1
      %s173 = scalar_select %p170, %s171, %s172
      %p176 = pneg %p170
      %p177 = scmp.eq.s32.totalorder %s15, 1
      %p178 = por %p176, %p177
      %p179 = scmp.ne.s32.totalorder %s171, %s174
      %p180 = scmp.eq.s32.totalorder %s15, 0
      %p181 = por %p179, %p180
      %p182 = scmp.ne.s32.totalorder %s171, %s174
      %p183 = scmp.eq.s32.totalorder %s20, 1
      %p184 = por %p182, %p183
      %p185 = scmp.ne.s32.totalorder %s174, %s175
      %p186 = scmp.eq.s32.totalorder %s20, 0
      %p187 = por %p185, %p186
      %p188 = scmp.ne.s32.totalorder %s174, %s175
      %p189 = scmp.eq.s32.totalorder %s21, 1
      %p190 = por %p188, %p189
      %p192 = scmp.ne.s32.totalorder %s175, %s191
      %p193 = scmp.eq.s32.totalorder %s21, 0
      %p194 = por %p192, %p193
      %p195 = scmp.le.s32.totalorder 1, %s15
      %p196 = scmp.lt.s32.totalorder %s15, 3
      %p197 = pnand %p195, %p196
      %p198 = pneg %p197
      // Predicated region
      $region9: #{tpu_custom_call.1} parent=5 // pred_check
        _
      $region10: #{tpu_custom_call.1} parent=5 // pred_check_branch
        %200 = sbr.rel (%p197) target = $region12
      $region11: #{tpu_custom_call.1} parent=5 // pred_region
        %s201 = ssub.s32 %s15, 1
        // Predicated region
        $region13: #{tpu_custom_call.1} parent=11 // pred_check
          %p202 = pneg %p140
        $region14: #{tpu_custom_call.1} parent=11 // pred_check_branch
          %204 = sbr.rel (%p202) target = $region16
        $region15: #{tpu_custom_call.1} parent=11 // pred_region
          _
        $region16: #{tpu_custom_call.1} parent=11 // pred_fallthru
          _
        // Predicated region
        $region17: #{tpu_custom_call.1} parent=11 // pred_check
          %p205 = pneg %p161
        $region18: #{tpu_custom_call.1} parent=11 // pred_check_branch
          %207 = sbr.rel (%p205) target = $region20
        $region19: #{tpu_custom_call.1} parent=11 // pred_region
          _
        $region20: #{tpu_custom_call.1} parent=11 // pred_fallthru
          _
      $region12: #{tpu_custom_call.1} parent=5 // pred_fallthru
        _
      %p208 = scmp.lt.s32.totalorder %s15, 2
      // Predicated region
      $region21: #{tpu_custom_call.1} parent=5 // pred_check
        %p209 = pneg %p208
      $region22: #{tpu_custom_call.1} parent=5 // pred_check_branch
        %211 = sbr.rel (%p209) target = $region24
      $region23: #{tpu_custom_call.1} parent=5 // pred_region
        // Predicated region
        $region25: #{tpu_custom_call.1} parent=23 // pred_check
          %p212 = pneg %p35
        $region26: #{tpu_custom_call.1} parent=23 // pred_check_branch
          %214 = sbr.rel (%p212) target = $region28
        $region27: #{tpu_custom_call.1} parent=23 // pred_region
          %s215 = smul.u32 16, %s15
          %p216 = scmp.lt.s32.totalorder %s215, 31
          %s217 = scalar_select %p216, %s215, 31
          %s218 = smul.addr %s217, 8
          %s219 = scalar_lea.vmem %s0, %s218
          %s220 = smul.u32 16, %s15
        $region28: #{tpu_custom_call.1} parent=23 // pred_fallthru
          _
        // Predicated region
        $region29: #{tpu_custom_call.1} parent=23 // pred_check
          %p221 = pneg %p61
        $region30: #{tpu_custom_call.1} parent=23 // pred_check_branch
          %223 = sbr.rel (%p221) target = $region32
        $region31: #{tpu_custom_call.1} parent=23 // pred_region
          %s224 = smul.u32 16, %s15
          %p225 = scmp.lt.s32.totalorder %s224, 31
          %s226 = scalar_select %p225, %s224, 31
          %s227 = smul.addr %s226, 8
          %s228 = scalar_lea.vmem %s1, %s227
          %s229 = smul.u32 16, %s15
        $region32: #{tpu_custom_call.1} parent=23 // pred_fallthru
          _
        // Predicated region
        $region33: #{tpu_custom_call.1} parent=23 // pred_check
          %p230 = pneg %p87
        $region34: #{tpu_custom_call.1} parent=23 // pred_check_branch
          %232 = sbr.rel (%p230) target = $region36
        $region35: #{tpu_custom_call.1} parent=23 // pred_region
          %s233 = smul.u32 16, %s15
          %p234 = scmp.lt.s32.totalorder %s233, 31
          %s235 = scalar_select %p234, %s233, 31
          %s236 = smul.addr %s235, 8
          %s237 = scalar_lea.vmem %s2, %s236
          %s238 = smul.u32 16, %s15
        $region36: #{tpu_custom_call.1} parent=23 // pred_fallthru
          _
        // Predicated region
        $region37: #{tpu_custom_call.1} parent=23 // pred_check
          %p239 = pneg %p113
        $region38: #{tpu_custom_call.1} parent=23 // pred_check_branch
          %241 = sbr.rel (%p239) target = $region40
        $region39: #{tpu_custom_call.1} parent=23 // pred_region
          %s242 = smul.u32 16, %s15
          %p243 = scmp.lt.s32.totalorder %s242, 31
          %s244 = scalar_select %p243, %s242, 31
          %s245 = smul.addr %s244, 8
          %s246 = scalar_lea.vmem %s3, %s245
          %s247 = smul.u32 16, %s15
        $region40: #{tpu_custom_call.1} parent=23 // pred_fallthru
          _
      $region24: #{tpu_custom_call.1} parent=5 // pred_fallthru
        _
      %p248 = scmp.le.s32.totalorder 1, %s15
      %p249 = scmp.lt.s32.totalorder %s15, 3
      %p250 = pnand %p248, %p249
      %p251 = pneg %p250
      // Predicated region
      $region41: #{tpu_custom_call.1} parent=5 // pred_check
        _
      $region42: #{tpu_custom_call.1} parent=5 // pred_check_branch
        %253 = sbr.rel (%p250) target = $region44
      $region43: #{tpu_custom_call.1} parent=5 // pred_region
        %s254 = ssub.s32 %s15, 1
        %s255 = smul.u32 16, %s20
        %p256 = scmp.lt.s32.totalorder %s255, 31
        %s257 = scalar_select %p256, %s255, 31
        %s258 = smul.addr %s257, 8
        %s259 = scalar_lea.vmem %s0, %s258
        %p260 = pneg %p41
        %p261 = pneg %p38
        %s262 = smul.u32 16, %s20
        %p263 = scmp.lt.s32.totalorder %s262, 31
        %s264 = scalar_select %p263, %s262, 31
        %s265 = smul.addr %s264, 8
        %s266 = scalar_lea.vmem %s1, %s265
        %p267 = pneg %p67
        %p268 = pneg %p64
        %s269 = smul.u32 16, %s20
        %p270 = scmp.lt.s32.totalorder %s269, 31
        %s271 = scalar_select %p270, %s269, 31
        %s272 = smul.addr %s271, 8
        %s273 = scalar_lea.vmem %s2, %s272
        %p274 = pneg %p93
        %p275 = pneg %p90
        %s276 = smul.u32 16, %s20
        %p277 = scmp.lt.s32.totalorder %s276, 31
        %s278 = scalar_select %p277, %s276, 31
        %s279 = smul.addr %s278, 8
        %s280 = scalar_lea.vmem %s3, %s279
        %p281 = pneg %p119
        %p282 = pneg %p116
        %p283 = pneg %p140
        %p284 = pneg %p137
        %p285 = pneg %p161
        %p286 = pneg %p158
        %p287 = pneg %p187
        %p288 = pneg %p184
        %s289 = sand.u32 %s174, 1
        %s290 = scalar_lea.sflag [#allocation3], %s289
        %s291 = sand.u32 %s174, 1
        %s292 = smul.addr %s291, 128
        %s293 = scalar_lea.vmem [#allocation2], %s292
        %s294 = smul.u32 16, %s20
        %p295 = scmp.lt.s32.totalorder %s294, 31
        %s296 = scalar_select %p295, %s294, 31
        %s297 = smul.addr %s296, 8
        %s298 = scalar_lea.vmem %s0, %s297
        %s299 = smul.u32 16, %s20
        %s300 = smul.u32 16, %s20
        %p301 = scmp.lt.s32.totalorder %s300, 31
        %s302 = scalar_select %p301, %s300, 31
        %s303 = smul.addr %s302, 8
        %s304 = scalar_lea.vmem %s1, %s303
        %s305 = smul.u32 16, %s20
        %s306 = smul.u32 16, %s20
        %p307 = scmp.lt.s32.totalorder %s306, 31
        %s308 = scalar_select %p307, %s306, 31
        %s309 = smul.addr %s308, 8
        %s310 = scalar_lea.vmem %s2, %s309
        %s311 = smul.u32 16, %s20
        %s312 = smul.u32 16, %s20
        %p313 = scmp.lt.s32.totalorder %s312, 31
        %s314 = scalar_select %p313, %s312, 31
        %s315 = smul.addr %s314, 8
        %s316 = scalar_lea.vmem %s3, %s315
        %s317 = smul.u32 16, %s20
        %s318 = smul.u32 16, %s20
        %v319 = vlaneseq
        %v320 = vand.u32 %v319, 127
        %v321 = vld [vmem:[%s310] sm:$0xff]
        %v322 = vld [vmem:[%s310 + $0x8] sm:$0xff]
        %v323 = vld [vmem:[%s310 + $0x10] sm:$0xff]
        %v324 = vld [vmem:[%s310 + $0x18] sm:$0xff]
        %v325 = vld [vmem:[%s310 + $0x20] sm:$0xff]
        %v326 = vld [vmem:[%s310 + $0x28] sm:$0xff]
        %v327 = vld [vmem:[%s310 + $0x30] sm:$0xff]
        %v328 = vld [vmem:[%s310 + $0x38] sm:$0xff]
        %v329 = vld [vmem:[%s310 + $0x40] sm:$0xff]
        %v330 = vld [vmem:[%s310 + $0x48] sm:$0xff]
        %v331 = vld [vmem:[%s310 + $0x50] sm:$0xff]
        %v332 = vld [vmem:[%s310 + $0x58] sm:$0xff]
        %v333 = vld [vmem:[%s310 + $0x60] sm:$0xff]
        %v334 = vld [vmem:[%s310 + $0x68] sm:$0xff]
        %v335 = vld [vmem:[%s310 + $0x70] sm:$0xff]
        %v336 = vld [vmem:[%s310 + $0x78] sm:$0xff]
        %337 = vset.pattern.permute.xlu0 0
        %338 = vperm.xlu0 %337, %v321
        %v339 = vpop.permute.xlu0 %338
        %340 = vset.pattern.permute.xlu0 0
        %341 = vperm.xlu0 %340, %v322
        %v342 = vpop.permute.xlu0 %341
        %343 = vset.pattern.permute.xlu0 0
        %344 = vperm.xlu0 %343, %v323
        %v345 = vpop.permute.xlu0 %344
        %346 = vset.pattern.permute.xlu0 0
        %347 = vperm.xlu0 %346, %v324
        %v348 = vpop.permute.xlu0 %347
        %349 = vset.pattern.permute.xlu0 0
        %350 = vperm.xlu0 %349, %v325
        %v351 = vpop.permute.xlu0 %350
        %352 = vset.pattern.permute.xlu0 0
        %353 = vperm.xlu0 %352, %v326
        %v354 = vpop.permute.xlu0 %353
        %355 = vset.pattern.permute.xlu0 0
        %356 = vperm.xlu0 %355, %v327
        %v357 = vpop.permute.xlu0 %356
        %358 = vset.pattern.permute.xlu0 0
        %359 = vperm.xlu0 %358, %v328
        %v360 = vpop.permute.xlu0 %359
        %361 = vset.pattern.permute.xlu0 0
        %362 = vperm.xlu0 %361, %v329
        %v363 = vpop.permute.xlu0 %362
        %364 = vset.pattern.permute.xlu0 0
        %365 = vperm.xlu0 %364, %v330
        %v366 = vpop.permute.xlu0 %365
        %367 = vset.pattern.permute.xlu0 0
        %368 = vperm.xlu0 %367, %v331
        %v369 = vpop.permute.xlu0 %368
        %370 = vset.pattern.permute.xlu0 0
        %371 = vperm.xlu0 %370, %v332
        %v372 = vpop.permute.xlu0 %371
        %373 = vset.pattern.permute.xlu0 0
        %374 = vperm.xlu0 %373, %v333
        %v375 = vpop.permute.xlu0 %374
        %376 = vset.pattern.permute.xlu0 0
        %377 = vperm.xlu0 %376, %v334
        %v378 = vpop.permute.xlu0 %377
        %379 = vset.pattern.permute.xlu0 0
        %380 = vperm.xlu0 %379, %v335
        %v381 = vpop.permute.xlu0 %380
        %382 = vset.pattern.permute.xlu0 0
        %383 = vperm.xlu0 %382, %v336
        %v384 = vpop.permute.xlu0 %383
        %vm385 = vcmp.eq.s32.totalorder %v339, %v320
        %vm386 = vcmp.eq.s32.totalorder %v342, %v320
        %vm387 = vcmp.eq.s32.totalorder %v345, %v320
        %vm388 = vcmp.eq.s32.totalorder %v348, %v320
        %vm389 = vcmp.eq.s32.totalorder %v351, %v320
        %vm390 = vcmp.eq.s32.totalorder %v354, %v320
        %vm391 = vcmp.eq.s32.totalorder %v357, %v320
        %vm392 = vcmp.eq.s32.totalorder %v360, %v320
        %vm393 = vcmp.eq.s32.totalorder %v363, %v320
        %vm394 = vcmp.eq.s32.totalorder %v366, %v320
        %vm395 = vcmp.eq.s32.totalorder %v369, %v320
        %vm396 = vcmp.eq.s32.totalorder %v372, %v320
        %vm397 = vcmp.eq.s32.totalorder %v375, %v320
        %vm398 = vcmp.eq.s32.totalorder %v378, %v320
        %vm399 = vcmp.eq.s32.totalorder %v381, %v320
        %vm400 = vcmp.eq.s32.totalorder %v384, %v320
        %v401 = vsel %vm385, 1, 0
        %v402 = vsel %vm386, 1, 0
        %v403 = vsel %vm387, 1, 0
        %v404 = vsel %vm388, 1, 0
        %v405 = vsel %vm389, 1, 0
        %v406 = vsel %vm390, 1, 0
        %v407 = vsel %vm391, 1, 0
        %v408 = vsel %vm392, 1, 0
        %v409 = vsel %vm393, 1, 0
        %v410 = vsel %vm394, 1, 0
        %v411 = vsel %vm395, 1, 0
        %v412 = vsel %vm396, 1, 0
        %v413 = vsel %vm397, 1, 0
        %v414 = vsel %vm398, 1, 0
        %v415 = vsel %vm399, 1, 0
        %v416 = vsel %vm400, 1, 0
        %417 = vset.pattern.permute.xlu0 1
        %418 = vperm.xlu0 %417, %v321
        %v419 = vpop.permute.xlu0 %418
        %420 = vset.pattern.permute.xlu0 1
        %421 = vperm.xlu0 %420, %v322
        %v422 = vpop.permute.xlu0 %421
        %423 = vset.pattern.permute.xlu0 1
        %424 = vperm.xlu0 %423, %v323
        %v425 = vpop.permute.xlu0 %424
        %426 = vset.pattern.permute.xlu0 1
        %427 = vperm.xlu0 %426, %v324
        %v428 = vpop.permute.xlu0 %427
        %429 = vset.pattern.permute.xlu0 1
        %430 = vperm.xlu0 %429, %v325
        %v431 = vpop.permute.xlu0 %430
        %432 = vset.pattern.permute.xlu0 1
        %433 = vperm.xlu0 %432, %v326
        %v434 = vpop.permute.xlu0 %433
        %435 = vset.pattern.permute.xlu0 1
        %436 = vperm.xlu0 %435, %v327
        %v437 = vpop.permute.xlu0 %436
        %438 = vset.pattern.permute.xlu0 1
        %439 = vperm.xlu0 %438, %v328
        %v440 = vpop.permute.xlu0 %439
        %441 = vset.pattern.permute.xlu0 1
        %442 = vperm.xlu0 %441, %v329
        %v443 = vpop.permute.xlu0 %442
        %444 = vset.pattern.permute.xlu0 1
        %445 = vperm.xlu0 %444, %v330
        %v446 = vpop.permute.xlu0 %445
        %447 = vset.pattern.permute.xlu0 1
        %448 = vperm.xlu0 %447, %v331
        %v449 = vpop.permute.xlu0 %448
        %450 = vset.pattern.permute.xlu0 1
        %451 = vperm.xlu0 %450, %v332
        %v452 = vpop.permute.xlu0 %451
        %453 = vset.pattern.permute.xlu0 1
        %454 = vperm.xlu0 %453, %v333
        %v455 = vpop.permute.xlu0 %454
        %456 = vset.pattern.permute.xlu0 1
        %457 = vperm.xlu0 %456, %v334
        %v458 = vpop.permute.xlu0 %457
        %459 = vset.pattern.permute.xlu0 1
        %460 = vperm.xlu0 %459, %v335
        %v461 = vpop.permute.xlu0 %460
        %462 = vset.pattern.permute.xlu0 1
        %463 = vperm.xlu0 %462, %v336
        %v464 = vpop.permute.xlu0 %463
        %vm465 = vcmp.eq.s32.totalorder %v419, %v320
        %vm466 = vcmp.eq.s32.totalorder %v422, %v320
        %vm467 = vcmp.eq.s32.totalorder %v425, %v320
        %vm468 = vcmp.eq.s32.totalorder %v428, %v320
        %vm469 = vcmp.eq.s32.totalorder %v431, %v320
        %vm470 = vcmp.eq.s32.totalorder %v434, %v320
        %vm471 = vcmp.eq.s32.totalorder %v437, %v320
        %vm472 = vcmp.eq.s32.totalorder %v440, %v320
        %vm473 = vcmp.eq.s32.totalorder %v443, %v320
        %vm474 = vcmp.eq.s32.totalorder %v446, %v320
        %vm475 = vcmp.eq.s32.totalorder %v449, %v320
        %vm476 = vcmp.eq.s32.totalorder %v452, %v320
        %vm477 = vcmp.eq.s32.totalorder %v455, %v320
        %vm478 = vcmp.eq.s32.totalorder %v458, %v320
        %vm479 = vcmp.eq.s32.totalorder %v461, %v320
        %vm480 = vcmp.eq.s32.totalorder %v464, %v320
        %v481 = vsel %vm465, 1, 0
        %v482 = vsel %vm466, 1, 0
        %v483 = vsel %vm467, 1, 0
        %v484 = vsel %vm468, 1, 0
        %v485 = vsel %vm469, 1, 0
        %v486 = vsel %vm470, 1, 0
        %v487 = vsel %vm471, 1, 0
        %v488 = vsel %vm472, 1, 0
        %v489 = vsel %vm473, 1, 0
        %v490 = vsel %vm474, 1, 0
        %v491 = vsel %vm475, 1, 0
        %v492 = vsel %vm476, 1, 0
        %v493 = vsel %vm477, 1, 0
        %v494 = vsel %vm478, 1, 0
        %v495 = vsel %vm479, 1, 0
        %v496 = vsel %vm480, 1, 0
        %v497 = vadd.s32 %v401, %v481
        %v498 = vadd.s32 %v402, %v482
        %v499 = vadd.s32 %v403, %v483
        %v500 = vadd.s32 %v404, %v484
        %v501 = vadd.s32 %v405, %v485
        %v502 = vadd.s32 %v406, %v486
        %v503 = vadd.s32 %v407, %v487
        %v504 = vadd.s32 %v408, %v488
        %v505 = vadd.s32 %v409, %v489
        %v506 = vadd.s32 %v410, %v490
        %v507 = vadd.s32 %v411, %v491
        %v508 = vadd.s32 %v412, %v492
        %v509 = vadd.s32 %v413, %v493
        %v510 = vadd.s32 %v414, %v494
        %v511 = vadd.s32 %v415, %v495
        %v512 = vadd.s32 %v416, %v496
        %513 = vset.pattern.permute.xlu0 2
        %514 = vperm.xlu0 %513, %v321
        %v515 = vpop.permute.xlu0 %514
        %516 = vset.pattern.permute.xlu0 2
        %517 = vperm.xlu0 %516, %v322
        %v518 = vpop.permute.xlu0 %517
        %519 = vset.pattern.permute.xlu0 2
        %520 = vperm.xlu0 %519, %v323
        %v521 = vpop.permute.xlu0 %520
        %522 = vset.pattern.permute.xlu0 2
        %523 = vperm.xlu0 %522, %v324
        %v524 = vpop.permute.xlu0 %523
        %525 = vset.pattern.permute.xlu0 2
        %526 = vperm.xlu0 %525, %v325
        %v527 = vpop.permute.xlu0 %526
        %528 = vset.pattern.permute.xlu0 2
        %529 = vperm.xlu0 %528, %v326
        %v530 = vpop.permute.xlu0 %529
        %531 = vset.pattern.permute.xlu0 2
        %532 = vperm.xlu0 %531, %v327
        %v533 = vpop.permute.xlu0 %532
        %534 = vset.pattern.permute.xlu0 2
        %535 = vperm.xlu0 %534, %v328
        %v536 = vpop.permute.xlu0 %535
        %537 = vset.pattern.permute.xlu0 2
        %538 = vperm.xlu0 %537, %v329
        %v539 = vpop.permute.xlu0 %538
        %540 = vset.pattern.permute.xlu0 2
        %541 = vperm.xlu0 %540, %v330
        %v542 = vpop.permute.xlu0 %541
        %543 = vset.pattern.permute.xlu0 2
        %544 = vperm.xlu0 %543, %v331
        %v545 = vpop.permute.xlu0 %544
        %546 = vset.pattern.permute.xlu0 2
        %547 = vperm.xlu0 %546, %v332
        %v548 = vpop.permute.xlu0 %547
        %549 = vset.pattern.permute.xlu0 2
        %550 = vperm.xlu0 %549, %v333
        %v551 = vpop.permute.xlu0 %550
        %552 = vset.pattern.permute.xlu0 2
        %553 = vperm.xlu0 %552, %v334
        %v554 = vpop.permute.xlu0 %553
        %555 = vset.pattern.permute.xlu0 2
        %556 = vperm.xlu0 %555, %v335
        %v557 = vpop.permute.xlu0 %556
        %558 = vset.pattern.permute.xlu0 2
        %559 = vperm.xlu0 %558, %v336
        %v560 = vpop.permute.xlu0 %559
        %vm561 = vcmp.eq.s32.totalorder %v515, %v320
        %vm562 = vcmp.eq.s32.totalorder %v518, %v320
        %vm563 = vcmp.eq.s32.totalorder %v521, %v320
        %vm564 = vcmp.eq.s32.totalorder %v524, %v320
        %vm565 = vcmp.eq.s32.totalorder %v527, %v320
        %vm566 = vcmp.eq.s32.totalorder %v530, %v320
        %vm567 = vcmp.eq.s32.totalorder %v533, %v320
        %vm568 = vcmp.eq.s32.totalorder %v536, %v320
        %vm569 = vcmp.eq.s32.totalorder %v539, %v320
        %vm570 = vcmp.eq.s32.totalorder %v542, %v320
        %vm571 = vcmp.eq.s32.totalorder %v545, %v320
        %vm572 = vcmp.eq.s32.totalorder %v548, %v320
        %vm573 = vcmp.eq.s32.totalorder %v551, %v320
        %vm574 = vcmp.eq.s32.totalorder %v554, %v320
        %vm575 = vcmp.eq.s32.totalorder %v557, %v320
        %vm576 = vcmp.eq.s32.totalorder %v560, %v320
        %v577 = vsel %vm561, 1, 0
        %v578 = vsel %vm562, 1, 0
        %v579 = vsel %vm563, 1, 0
        %v580 = vsel %vm564, 1, 0
        %v581 = vsel %vm565, 1, 0
        %v582 = vsel %vm566, 1, 0
        %v583 = vsel %vm567, 1, 0
        %v584 = vsel %vm568, 1, 0
        %v585 = vsel %vm569, 1, 0
        %v586 = vsel %vm570, 1, 0
        %v587 = vsel %vm571, 1, 0
        %v588 = vsel %vm572, 1, 0
        %v589 = vsel %vm573, 1, 0
        %v590 = vsel %vm574, 1, 0
        %v591 = vsel %vm575, 1, 0
        %v592 = vsel %vm576, 1, 0
        %v593 = vadd.s32 %v497, %v577
        %v594 = vadd.s32 %v498, %v578
        %v595 = vadd.s32 %v499, %v579
        %v596 = vadd.s32 %v500, %v580
        %v597 = vadd.s32 %v501, %v581
        %v598 = vadd.s32 %v502, %v582
        %v599 = vadd.s32 %v503, %v583
        %v600 = vadd.s32 %v504, %v584
        %v601 = vadd.s32 %v505, %v585
        %v602 = vadd.s32 %v506, %v586
        %v603 = vadd.s32 %v507, %v587
        %v604 = vadd.s32 %v508, %v588
        %v605 = vadd.s32 %v509, %v589
        %v606 = vadd.s32 %v510, %v590
        %v607 = vadd.s32 %v511, %v591
        %v608 = vadd.s32 %v512, %v592
        %609 = vset.pattern.permute.xlu0 3
        %610 = vperm.xlu0 %609, %v321
        %v611 = vpop.permute.xlu0 %610
        %612 = vset.pattern.permute.xlu0 3
        %613 = vperm.xlu0 %612, %v322
        %v614 = vpop.permute.xlu0 %613
        %615 = vset.pattern.permute.xlu0 3
        %616 = vperm.xlu0 %615, %v323
        %v617 = vpop.permute.xlu0 %616
        %618 = vset.pattern.permute.xlu0 3
        %619 = vperm.xlu0 %618, %v324
        %v620 = vpop.permute.xlu0 %619
        %621 = vset.pattern.permute.xlu0 3
        %622 = vperm.xlu0 %621, %v325
        %v623 = vpop.permute.xlu0 %622
        %624 = vset.pattern.permute.xlu0 3
        %625 = vperm.xlu0 %624, %v326
        %v626 = vpop.permute.xlu0 %625
        %627 = vset.pattern.permute.xlu0 3
        %628 = vperm.xlu0 %627, %v327
        %v629 = vpop.permute.xlu0 %628
        %630 = vset.pattern.permute.xlu0 3
        %631 = vperm.xlu0 %630, %v328
        %v632 = vpop.permute.xlu0 %631
        %633 = vset.pattern.permute.xlu0 3
        %634 = vperm.xlu0 %633, %v329
        %v635 = vpop.permute.xlu0 %634
        %636 = vset.pattern.permute.xlu0 3
        %637 = vperm.xlu0 %636, %v330
        %v638 = vpop.permute.xlu0 %637
        %639 = vset.pattern.permute.xlu0 3
        %640 = vperm.xlu0 %639, %v331
        %v641 = vpop.permute.xlu0 %640
        %642 = vset.pattern.permute.xlu0 3
        %643 = vperm.xlu0 %642, %v332
        %v644 = vpop.permute.xlu0 %643
        %645 = vset.pattern.permute.xlu0 3
        %646 = vperm.xlu0 %645, %v333
        %v647 = vpop.permute.xlu0 %646
        %648 = vset.pattern.permute.xlu0 3
        %649 = vperm.xlu0 %648, %v334
        %v650 = vpop.permute.xlu0 %649
        %651 = vset.pattern.permute.xlu0 3
        %652 = vperm.xlu0 %651, %v335
        %v653 = vpop.permute.xlu0 %652
        %654 = vset.pattern.permute.xlu0 3
        %655 = vperm.xlu0 %654, %v336
        %v656 = vpop.permute.xlu0 %655
        %vm657 = vcmp.eq.s32.totalorder %v611, %v320
        %vm658 = vcmp.eq.s32.totalorder %v614, %v320
        %vm659 = vcmp.eq.s32.totalorder %v617, %v320
        %vm660 = vcmp.eq.s32.totalorder %v620, %v320
        %vm661 = vcmp.eq.s32.totalorder %v623, %v320
        %vm662 = vcmp.eq.s32.totalorder %v626, %v320
        %vm663 = vcmp.eq.s32.totalorder %v629, %v320
        %vm664 = vcmp.eq.s32.totalorder %v632, %v320
        %vm665 = vcmp.eq.s32.totalorder %v635, %v320
        %vm666 = vcmp.eq.s32.totalorder %v638, %v320
        %vm667 = vcmp.eq.s32.totalorder %v641, %v320
        %vm668 = vcmp.eq.s32.totalorder %v644, %v320
        %vm669 = vcmp.eq.s32.totalorder %v647, %v320
        %vm670 = vcmp.eq.s32.totalorder %v650, %v320
        %vm671 = vcmp.eq.s32.totalorder %v653, %v320
        %vm672 = vcmp.eq.s32.totalorder %v656, %v320
        %v673 = vsel %vm657, 1, 0
        %v674 = vsel %vm658, 1, 0
        %v675 = vsel %vm659, 1, 0
        %v676 = vsel %vm660, 1, 0
        %v677 = vsel %vm661, 1, 0
        %v678 = vsel %vm662, 1, 0
        %v679 = vsel %vm663, 1, 0
        %v680 = vsel %vm664, 1, 0
        %v681 = vsel %vm665, 1, 0
        %v682 = vsel %vm666, 1, 0
        %v683 = vsel %vm667, 1, 0
        %v684 = vsel %vm668, 1, 0
        %v685 = vsel %vm669, 1, 0
        %v686 = vsel %vm670, 1, 0
        %v687 = vsel %vm671, 1, 0
        %v688 = vsel %vm672, 1, 0
        %v689 = vadd.s32 %v593, %v673
        %v690 = vadd.s32 %v594, %v674
        %v691 = vadd.s32 %v595, %v675
        %v692 = vadd.s32 %v596, %v676
        %v693 = vadd.s32 %v597, %v677
        %v694 = vadd.s32 %v598, %v678
        %v695 = vadd.s32 %v599, %v679
        %v696 = vadd.s32 %v600, %v680
        %v697 = vadd.s32 %v601, %v681
        %v698 = vadd.s32 %v602, %v682
        %v699 = vadd.s32 %v603, %v683
        %v700 = vadd.s32 %v604, %v684
        %v701 = vadd.s32 %v605, %v685
        %v702 = vadd.s32 %v606, %v686
        %v703 = vadd.s32 %v607, %v687
        %v704 = vadd.s32 %v608, %v688
        %705 = vset.pattern.permute.xlu0 4
        %706 = vperm.xlu0 %705, %v321
        %v707 = vpop.permute.xlu0 %706
        %708 = vset.pattern.permute.xlu0 4
        %709 = vperm.xlu0 %708, %v322
        %v710 = vpop.permute.xlu0 %709
        %711 = vset.pattern.permute.xlu0 4
        %712 = vperm.xlu0 %711, %v323
        %v713 = vpop.permute.xlu0 %712
        %714 = vset.pattern.permute.xlu0 4
        %715 = vperm.xlu0 %714, %v324
        %v716 = vpop.permute.xlu0 %715
        %717 = vset.pattern.permute.xlu0 4
        %718 = vperm.xlu0 %717, %v325
        %v719 = vpop.permute.xlu0 %718
        %720 = vset.pattern.permute.xlu0 4
        %721 = vperm.xlu0 %720, %v326
        %v722 = vpop.permute.xlu0 %721
        %723 = vset.pattern.permute.xlu0 4
        %724 = vperm.xlu0 %723, %v327
        %v725 = vpop.permute.xlu0 %724
        %726 = vset.pattern.permute.xlu0 4
        %727 = vperm.xlu0 %726, %v328
        %v728 = vpop.permute.xlu0 %727
        %729 = vset.pattern.permute.xlu0 4
        %730 = vperm.xlu0 %729, %v329
        %v731 = vpop.permute.xlu0 %730
        %732 = vset.pattern.permute.xlu0 4
        %733 = vperm.xlu0 %732, %v330
        %v734 = vpop.permute.xlu0 %733
        %735 = vset.pattern.permute.xlu0 4
        %736 = vperm.xlu0 %735, %v331
        %v737 = vpop.permute.xlu0 %736
        %738 = vset.pattern.permute.xlu0 4
        %739 = vperm.xlu0 %738, %v332
        %v740 = vpop.permute.xlu0 %739
        %741 = vset.pattern.permute.xlu0 4
        %742 = vperm.xlu0 %741, %v333
        %v743 = vpop.permute.xlu0 %742
        %744 = vset.pattern.permute.xlu0 4
        %745 = vperm.xlu0 %744, %v334
        %v746 = vpop.permute.xlu0 %745
        %747 = vset.pattern.permute.xlu0 4
        %748 = vperm.xlu0 %747, %v335
        %v749 = vpop.permute.xlu0 %748
        %750 = vset.pattern.permute.xlu0 4
        %751 = vperm.xlu0 %750, %v336
        %v752 = vpop.permute.xlu0 %751
        %vm753 = vcmp.eq.s32.totalorder %v707, %v320
        %vm754 = vcmp.eq.s32.totalorder %v710, %v320
        %vm755 = vcmp.eq.s32.totalorder %v713, %v320
        %vm756 = vcmp.eq.s32.totalorder %v716, %v320
        %vm757 = vcmp.eq.s32.totalorder %v719, %v320
        %vm758 = vcmp.eq.s32.totalorder %v722, %v320
        %vm759 = vcmp.eq.s32.totalorder %v725, %v320
        %vm760 = vcmp.eq.s32.totalorder %v728, %v320
        %vm761 = vcmp.eq.s32.totalorder %v731, %v320
        %vm762 = vcmp.eq.s32.totalorder %v734, %v320
        %vm763 = vcmp.eq.s32.totalorder %v737, %v320
        %vm764 = vcmp.eq.s32.totalorder %v740, %v320
        %vm765 = vcmp.eq.s32.totalorder %v743, %v320
        %vm766 = vcmp.eq.s32.totalorder %v746, %v320
        %vm767 = vcmp.eq.s32.totalorder %v749, %v320
        %vm768 = vcmp.eq.s32.totalorder %v752, %v320
        %v769 = vsel %vm753, 1, 0
        %v770 = vsel %vm754, 1, 0
        %v771 = vsel %vm755, 1, 0
        %v772 = vsel %vm756, 1, 0
        %v773 = vsel %vm757, 1, 0
        %v774 = vsel %vm758, 1, 0
        %v775 = vsel %vm759, 1, 0
        %v776 = vsel %vm760, 1, 0
        %v777 = vsel %vm761, 1, 0
        %v778 = vsel %vm762, 1, 0
        %v779 = vsel %vm763, 1, 0
        %v780 = vsel %vm764, 1, 0
        %v781 = vsel %vm765, 1, 0
        %v782 = vsel %vm766, 1, 0
        %v783 = vsel %vm767, 1, 0
        %v784 = vsel %vm768, 1, 0
        %v785 = vadd.s32 %v689, %v769
        %v786 = vadd.s32 %v690, %v770
        %v787 = vadd.s32 %v691, %v771
        %v788 = vadd.s32 %v692, %v772
        %v789 = vadd.s32 %v693, %v773
        %v790 = vadd.s32 %v694, %v774
        %v791 = vadd.s32 %v695, %v775
        %v792 = vadd.s32 %v696, %v776
        %v793 = vadd.s32 %v697, %v777
        %v794 = vadd.s32 %v698, %v778
        %v795 = vadd.s32 %v699, %v779
        %v796 = vadd.s32 %v700, %v780
        %v797 = vadd.s32 %v701, %v781
        %v798 = vadd.s32 %v702, %v782
        %v799 = vadd.s32 %v703, %v783
        %v800 = vadd.s32 %v704, %v784
        %801 = vset.pattern.permute.xlu0 5
        %802 = vperm.xlu0 %801, %v321
        %v803 = vpop.permute.xlu0 %802
        %804 = vset.pattern.permute.xlu0 5
        %805 = vperm.xlu0 %804, %v322
        %v806 = vpop.permute.xlu0 %805
        %807 = vset.pattern.permute.xlu0 5
        %808 = vperm.xlu0 %807, %v323
        %v809 = vpop.permute.xlu0 %808
        %810 = vset.pattern.permute.xlu0 5
        %811 = vperm.xlu0 %810, %v324
        %v812 = vpop.permute.xlu0 %811
        %813 = vset.pattern.permute.xlu0 5
        %814 = vperm.xlu0 %813, %v325
        %v815 = vpop.permute.xlu0 %814
        %816 = vset.pattern.permute.xlu0 5
        %817 = vperm.xlu0 %816, %v326
        %v818 = vpop.permute.xlu0 %817
        %819 = vset.pattern.permute.xlu0 5
        %820 = vperm.xlu0 %819, %v327
        %v821 = vpop.permute.xlu0 %820
        %822 = vset.pattern.permute.xlu0 5
        %823 = vperm.xlu0 %822, %v328
        %v824 = vpop.permute.xlu0 %823
        %825 = vset.pattern.permute.xlu0 5
        %826 = vperm.xlu0 %825, %v329
        %v827 = vpop.permute.xlu0 %826
        %828 = vset.pattern.permute.xlu0 5
        %829 = vperm.xlu0 %828, %v330
        %v830 = vpop.permute.xlu0 %829
        %831 = vset.pattern.permute.xlu0 5
        %832 = vperm.xlu0 %831, %v331
        %v833 = vpop.permute.xlu0 %832
        %834 = vset.pattern.permute.xlu0 5
        %835 = vperm.xlu0 %834, %v332
        %v836 = vpop.permute.xlu0 %835
        %837 = vset.pattern.permute.xlu0 5
        %838 = vperm.xlu0 %837, %v333
        %v839 = vpop.permute.xlu0 %838
        %840 = vset.pattern.permute.xlu0 5
        %841 = vperm.xlu0 %840, %v334
        %v842 = vpop.permute.xlu0 %841
        %843 = vset.pattern.permute.xlu0 5
        %844 = vperm.xlu0 %843, %v335
        %v845 = vpop.permute.xlu0 %844
        %846 = vset.pattern.permute.xlu0 5
        %847 = vperm.xlu0 %846, %v336
        %v848 = vpop.permute.xlu0 %847
        %vm849 = vcmp.eq.s32.totalorder %v803, %v320
        %vm850 = vcmp.eq.s32.totalorder %v806, %v320
        %vm851 = vcmp.eq.s32.totalorder %v809, %v320
        %vm852 = vcmp.eq.s32.totalorder %v812, %v320
        %vm853 = vcmp.eq.s32.totalorder %v815, %v320
        %vm854 = vcmp.eq.s32.totalorder %v818, %v320
        %vm855 = vcmp.eq.s32.totalorder %v821, %v320
        %vm856 = vcmp.eq.s32.totalorder %v824, %v320
        %vm857 = vcmp.eq.s32.totalorder %v827, %v320
        %vm858 = vcmp.eq.s32.totalorder %v830, %v320
        %vm859 = vcmp.eq.s32.totalorder %v833, %v320
        %vm860 = vcmp.eq.s32.totalorder %v836, %v320
        %vm861 = vcmp.eq.s32.totalorder %v839, %v320
        %vm862 = vcmp.eq.s32.totalorder %v842, %v320
        %vm863 = vcmp.eq.s32.totalorder %v845, %v320
        %vm864 = vcmp.eq.s32.totalorder %v848, %v320
        %v865 = vsel %vm849, 1, 0
        %v866 = vsel %vm850, 1, 0
        %v867 = vsel %vm851, 1, 0
        %v868 = vsel %vm852, 1, 0
        %v869 = vsel %vm853, 1, 0
        %v870 = vsel %vm854, 1, 0
        %v871 = vsel %vm855, 1, 0
        %v872 = vsel %vm856, 1, 0
        %v873 = vsel %vm857, 1, 0
        %v874 = vsel %vm858, 1, 0
        %v875 = vsel %vm859, 1, 0
        %v876 = vsel %vm860, 1, 0
        %v877 = vsel %vm861, 1, 0
        %v878 = vsel %vm862, 1, 0
        %v879 = vsel %vm863, 1, 0
        %v880 = vsel %vm864, 1, 0
        %v881 = vadd.s32 %v785, %v865
        %v882 = vadd.s32 %v786, %v866
        %v883 = vadd.s32 %v787, %v867
        %v884 = vadd.s32 %v788, %v868
        %v885 = vadd.s32 %v789, %v869
        %v886 = vadd.s32 %v790, %v870
        %v887 = vadd.s32 %v791, %v871
        %v888 = vadd.s32 %v792, %v872
        %v889 = vadd.s32 %v793, %v873
        %v890 = vadd.s32 %v794, %v874
        %v891 = vadd.s32 %v795, %v875
        %v892 = vadd.s32 %v796, %v876
        %v893 = vadd.s32 %v797, %v877
        %v894 = vadd.s32 %v798, %v878
        %v895 = vadd.s32 %v799, %v879
        %v896 = vadd.s32 %v800, %v880
        %v897 = vld [vmem:[%s316] sm:$0xff]
        %v898 = vld [vmem:[%s316 + $0x8] sm:$0xff]
        %v899 = vld [vmem:[%s316 + $0x10] sm:$0xff]
        %v900 = vld [vmem:[%s316 + $0x18] sm:$0xff]
        %v901 = vld [vmem:[%s316 + $0x20] sm:$0xff]
        %v902 = vld [vmem:[%s316 + $0x28] sm:$0xff]
        %v903 = vld [vmem:[%s316 + $0x30] sm:$0xff]
        %v904 = vld [vmem:[%s316 + $0x38] sm:$0xff]
        %v905 = vld [vmem:[%s316 + $0x40] sm:$0xff]
        %v906 = vld [vmem:[%s316 + $0x48] sm:$0xff]
        %v907 = vld [vmem:[%s316 + $0x50] sm:$0xff]
        %v908 = vld [vmem:[%s316 + $0x58] sm:$0xff]
        %v909 = vld [vmem:[%s316 + $0x60] sm:$0xff]
        %v910 = vld [vmem:[%s316 + $0x68] sm:$0xff]
        %v911 = vld [vmem:[%s316 + $0x70] sm:$0xff]
        %v912 = vld [vmem:[%s316 + $0x78] sm:$0xff]
        %v913 = vcvt.s32.f32 %v881
        %v914 = vcvt.s32.f32 %v882
        %v915 = vcvt.s32.f32 %v883
        %v916 = vcvt.s32.f32 %v884
        %v917 = vcvt.s32.f32 %v885
        %v918 = vcvt.s32.f32 %v886
        %v919 = vcvt.s32.f32 %v887
        %v920 = vcvt.s32.f32 %v888
        %v921 = vcvt.s32.f32 %v889
        %v922 = vcvt.s32.f32 %v890
        %v923 = vcvt.s32.f32 %v891
        %v924 = vcvt.s32.f32 %v892
        %v925 = vcvt.s32.f32 %v893
        %v926 = vcvt.s32.f32 %v894
        %v927 = vcvt.s32.f32 %v895
        %v928 = vcvt.s32.f32 %v896
        %930 = vset.pattern.permute.xlu0 0
        %931 = vperm.xlu0 %930, %v897
        %v932 = vpop.permute.xlu0 %931
        %935 = vset.pattern.permute.xlu0 0
        %936 = vperm.xlu0 %935, %v898
        %v937 = vpop.permute.xlu0 %936
        %940 = vset.pattern.permute.xlu0 0
        %941 = vperm.xlu0 %940, %v899
        %v942 = vpop.permute.xlu0 %941
        %945 = vset.pattern.permute.xlu0 0
        %946 = vperm.xlu0 %945, %v900
        %v947 = vpop.permute.xlu0 %946
        %950 = vset.pattern.permute.xlu0 0
        %951 = vperm.xlu0 %950, %v901
        %v952 = vpop.permute.xlu0 %951
        %955 = vset.pattern.permute.xlu0 0
        %956 = vperm.xlu0 %955, %v902
        %v957 = vpop.permute.xlu0 %956
        %960 = vset.pattern.permute.xlu0 0
        %961 = vperm.xlu0 %960, %v903
        %v962 = vpop.permute.xlu0 %961
        %965 = vset.pattern.permute.xlu0 0
        %966 = vperm.xlu0 %965, %v904
        %v967 = vpop.permute.xlu0 %966
        %970 = vset.pattern.permute.xlu0 0
        %971 = vperm.xlu0 %970, %v905
        %v972 = vpop.permute.xlu0 %971
        %975 = vset.pattern.permute.xlu0 0
        %976 = vperm.xlu0 %975, %v906
        %v977 = vpop.permute.xlu0 %976
        %980 = vset.pattern.permute.xlu0 0
        %981 = vperm.xlu0 %980, %v907
        %v982 = vpop.permute.xlu0 %981
        %985 = vset.pattern.permute.xlu0 0
        %986 = vperm.xlu0 %985, %v908
        %v987 = vpop.permute.xlu0 %986
        %990 = vset.pattern.permute.xlu0 0
        %991 = vperm.xlu0 %990, %v909
        %v992 = vpop.permute.xlu0 %991
        %995 = vset.pattern.permute.xlu0 0
        %996 = vperm.xlu0 %995, %v910
        %v997 = vpop.permute.xlu0 %996
        %1000 = vset.pattern.permute.xlu0 0
        %1001 = vperm.xlu0 %1000, %v911
        %v1002 = vpop.permute.xlu0 %1001
        %1005 = vset.pattern.permute.xlu0 0
        %1006 = vperm.xlu0 %1005, %v912
        %v1007 = vpop.permute.xlu0 %1006
        %v1009 = vmul.f32 %v913, %v932
        %v1010 = vmul.f32 %v914, %v937
        %v1011 = vmul.f32 %v915, %v942
        %v1012 = vmul.f32 %v916, %v947
        %v1013 = vmul.f32 %v917, %v952
        %v1014 = vmul.f32 %v918, %v957
        %v1015 = vmul.f32 %v919, %v962
        %v1016 = vmul.f32 %v920, %v967
        %v1017 = vmul.f32 %v921, %v972
        %v1018 = vmul.f32 %v922, %v977
        %v1019 = vmul.f32 %v923, %v982
        %v1020 = vmul.f32 %v924, %v987
        %v1021 = vmul.f32 %v925, %v992
        %v1022 = vmul.f32 %v926, %v997
        %v1023 = vmul.f32 %v927, %v1002
        %v1024 = vmul.f32 %v928, %v1007
        %v1025 = vld [vmem:[%s304] sm:$0xff]
        %v1026 = vld [vmem:[%s304 + $0x8] sm:$0xff]
        %v1027 = vld [vmem:[%s304 + $0x10] sm:$0xff]
        %v1028 = vld [vmem:[%s304 + $0x18] sm:$0xff]
        %v1029 = vld [vmem:[%s304 + $0x20] sm:$0xff]
        %v1030 = vld [vmem:[%s304 + $0x28] sm:$0xff]
        %v1031 = vld [vmem:[%s304 + $0x30] sm:$0xff]
        %v1032 = vld [vmem:[%s304 + $0x38] sm:$0xff]
        %v1033 = vld [vmem:[%s304 + $0x40] sm:$0xff]
        %v1034 = vld [vmem:[%s304 + $0x48] sm:$0xff]
        %v1035 = vld [vmem:[%s304 + $0x50] sm:$0xff]
        %v1036 = vld [vmem:[%s304 + $0x58] sm:$0xff]
        %v1037 = vld [vmem:[%s304 + $0x60] sm:$0xff]
        %v1038 = vld [vmem:[%s304 + $0x68] sm:$0xff]
        %v1039 = vld [vmem:[%s304 + $0x70] sm:$0xff]
        %v1040 = vld [vmem:[%s304 + $0x78] sm:$0xff]
        %1041 = vset.pattern.permute.xlu0 0
        %1042 = vperm.xlu0 %1041, %v1025
        %v1043 = vpop.permute.xlu0 %1042
        %1044 = vset.pattern.permute.xlu0 0
        %1045 = vperm.xlu0 %1044, %v1026
        %v1046 = vpop.permute.xlu0 %1045
        %1047 = vset.pattern.permute.xlu0 0
        %1048 = vperm.xlu0 %1047, %v1027
        %v1049 = vpop.permute.xlu0 %1048
        %1050 = vset.pattern.permute.xlu0 0
        %1051 = vperm.xlu0 %1050, %v1028
        %v1052 = vpop.permute.xlu0 %1051
        %1053 = vset.pattern.permute.xlu0 0
        %1054 = vperm.xlu0 %1053, %v1029
        %v1055 = vpop.permute.xlu0 %1054
        %1056 = vset.pattern.permute.xlu0 0
        %1057 = vperm.xlu0 %1056, %v1030
        %v1058 = vpop.permute.xlu0 %1057
        %1059 = vset.pattern.permute.xlu0 0
        %1060 = vperm.xlu0 %1059, %v1031
        %v1061 = vpop.permute.xlu0 %1060
        %1062 = vset.pattern.permute.xlu0 0
        %1063 = vperm.xlu0 %1062, %v1032
        %v1064 = vpop.permute.xlu0 %1063
        %1065 = vset.pattern.permute.xlu0 0
        %1066 = vperm.xlu0 %1065, %v1033
        %v1067 = vpop.permute.xlu0 %1066
        %1068 = vset.pattern.permute.xlu0 0
        %1069 = vperm.xlu0 %1068, %v1034
        %v1070 = vpop.permute.xlu0 %1069
        %1071 = vset.pattern.permute.xlu0 0
        %1072 = vperm.xlu0 %1071, %v1035
        %v1073 = vpop.permute.xlu0 %1072
        %1074 = vset.pattern.permute.xlu0 0
        %1075 = vperm.xlu0 %1074, %v1036
        %v1076 = vpop.permute.xlu0 %1075
        %1077 = vset.pattern.permute.xlu0 0
        %1078 = vperm.xlu0 %1077, %v1037
        %v1079 = vpop.permute.xlu0 %1078
        %1080 = vset.pattern.permute.xlu0 0
        %1081 = vperm.xlu0 %1080, %v1038
        %v1082 = vpop.permute.xlu0 %1081
        %1083 = vset.pattern.permute.xlu0 0
        %1084 = vperm.xlu0 %1083, %v1039
        %v1085 = vpop.permute.xlu0 %1084
        %1086 = vset.pattern.permute.xlu0 0
        %1087 = vperm.xlu0 %1086, %v1040
        %v1088 = vpop.permute.xlu0 %1087
        %vm1089 = vcmp.eq.s32.totalorder %v1043, %v320
        %vm1090 = vcmp.eq.s32.totalorder %v1046, %v320
        %vm1091 = vcmp.eq.s32.totalorder %v1049, %v320
        %vm1092 = vcmp.eq.s32.totalorder %v1052, %v320
        %vm1093 = vcmp.eq.s32.totalorder %v1055, %v320
        %vm1094 = vcmp.eq.s32.totalorder %v1058, %v320
        %vm1095 = vcmp.eq.s32.totalorder %v1061, %v320
        %vm1096 = vcmp.eq.s32.totalorder %v1064, %v320
        %vm1097 = vcmp.eq.s32.totalorder %v1067, %v320
        %vm1098 = vcmp.eq.s32.totalorder %v1070, %v320
        %vm1099 = vcmp.eq.s32.totalorder %v1073, %v320
        %vm1100 = vcmp.eq.s32.totalorder %v1076, %v320
        %vm1101 = vcmp.eq.s32.totalorder %v1079, %v320
        %vm1102 = vcmp.eq.s32.totalorder %v1082, %v320
        %vm1103 = vcmp.eq.s32.totalorder %v1085, %v320
        %vm1104 = vcmp.eq.s32.totalorder %v1088, %v320
        %v1105 = vsel %vm1089, 1, 0
        %v1106 = vsel %vm1090, 1, 0
        %v1107 = vsel %vm1091, 1, 0
        %v1108 = vsel %vm1092, 1, 0
        %v1109 = vsel %vm1093, 1, 0
        %v1110 = vsel %vm1094, 1, 0
        %v1111 = vsel %vm1095, 1, 0
        %v1112 = vsel %vm1096, 1, 0
        %v1113 = vsel %vm1097, 1, 0
        %v1114 = vsel %vm1098, 1, 0
        %v1115 = vsel %vm1099, 1, 0
        %v1116 = vsel %vm1100, 1, 0
        %v1117 = vsel %vm1101, 1, 0
        %v1118 = vsel %vm1102, 1, 0
        %v1119 = vsel %vm1103, 1, 0
        %v1120 = vsel %vm1104, 1, 0
        %v1121 = vcvt.s32.f32 %v1105
        %v1122 = vcvt.s32.f32 %v1106
        %v1123 = vcvt.s32.f32 %v1107
        %v1124 = vcvt.s32.f32 %v1108
        %v1125 = vcvt.s32.f32 %v1109
        %v1126 = vcvt.s32.f32 %v1110
        %v1127 = vcvt.s32.f32 %v1111
        %v1128 = vcvt.s32.f32 %v1112
        %v1129 = vcvt.s32.f32 %v1113
        %v1130 = vcvt.s32.f32 %v1114
        %v1131 = vcvt.s32.f32 %v1115
        %v1132 = vcvt.s32.f32 %v1116
        %v1133 = vcvt.s32.f32 %v1117
        %v1134 = vcvt.s32.f32 %v1118
        %v1135 = vcvt.s32.f32 %v1119
        %v1136 = vcvt.s32.f32 %v1120
        %v1137 = vld [vmem:[%s298] sm:$0xff]
        %v1138 = vld [vmem:[%s298 + $0x8] sm:$0xff]
        %v1139 = vld [vmem:[%s298 + $0x10] sm:$0xff]
        %v1140 = vld [vmem:[%s298 + $0x18] sm:$0xff]
        %v1141 = vld [vmem:[%s298 + $0x20] sm:$0xff]
        %v1142 = vld [vmem:[%s298 + $0x28] sm:$0xff]
        %v1143 = vld [vmem:[%s298 + $0x30] sm:$0xff]
        %v1144 = vld [vmem:[%s298 + $0x38] sm:$0xff]
        %v1145 = vld [vmem:[%s298 + $0x40] sm:$0xff]
        %v1146 = vld [vmem:[%s298 + $0x48] sm:$0xff]
        %v1147 = vld [vmem:[%s298 + $0x50] sm:$0xff]
        %v1148 = vld [vmem:[%s298 + $0x58] sm:$0xff]
        %v1149 = vld [vmem:[%s298 + $0x60] sm:$0xff]
        %v1150 = vld [vmem:[%s298 + $0x68] sm:$0xff]
        %v1151 = vld [vmem:[%s298 + $0x70] sm:$0xff]
        %v1152 = vld [vmem:[%s298 + $0x78] sm:$0xff]
        %v1153 = vld [vmem:[%s4] sm:$0xff]
        %v1154 = vld [vmem:[%s4 + $0x8] sm:$0xff]
        %v1155 = vld [vmem:[%s4 + $0x10] sm:$0xff]
        %v1156 = vld [vmem:[%s4 + $0x18] sm:$0xff]
        %v1157 = vld [vmem:[%s4 + $0x20] sm:$0xff]
        %v1158 = vld [vmem:[%s4 + $0x28] sm:$0xff]
        %v1159 = vld [vmem:[%s4 + $0x30] sm:$0xff]
        %v1160 = vld [vmem:[%s4 + $0x38] sm:$0xff]
        %v1161 = vld [vmem:[%s4 + $0x40] sm:$0xff]
        %v1162 = vld [vmem:[%s4 + $0x48] sm:$0xff]
        %v1163 = vld [vmem:[%s4 + $0x50] sm:$0xff]
        %v1164 = vld [vmem:[%s4 + $0x58] sm:$0xff]
        %v1165 = vld [vmem:[%s4 + $0x60] sm:$0xff]
        %v1166 = vld [vmem:[%s4 + $0x68] sm:$0xff]
        %v1167 = vld [vmem:[%s4 + $0x70] sm:$0xff]
        %v1168 = vld [vmem:[%s4 + $0x78] sm:$0xff]
        %v1169 = vld [vmem:[%s4 + $0x80] sm:$0xff]
        %v1170 = vld [vmem:[%s4 + $0x88] sm:$0xff]
        %v1171 = vld [vmem:[%s4 + $0x90] sm:$0xff]
        %v1172 = vld [vmem:[%s4 + $0x98] sm:$0xff]
        %v1173 = vld [vmem:[%s4 + $0xa0] sm:$0xff]
        %v1174 = vld [vmem:[%s4 + $0xa8] sm:$0xff]
        %v1175 = vld [vmem:[%s4 + $0xb0] sm:$0xff]
        %v1176 = vld [vmem:[%s4 + $0xb8] sm:$0xff]
        %v1177 = vld [vmem:[%s4 + $0xc0] sm:$0xff]
        %v1178 = vld [vmem:[%s4 + $0xc8] sm:$0xff]
        %v1179 = vld [vmem:[%s4 + $0xd0] sm:$0xff]
        %v1180 = vld [vmem:[%s4 + $0xd8] sm:$0xff]
        %v1181 = vld [vmem:[%s4 + $0xe0] sm:$0xff]
        %v1182 = vld [vmem:[%s4 + $0xe8] sm:$0xff]
        %v1183 = vld [vmem:[%s4 + $0xf0] sm:$0xff]
        %v1184 = vld [vmem:[%s4 + $0xf8] sm:$0xff]
        %v1185 = vld [vmem:[%s4 + $0x100] sm:$0xff]
        %v1186 = vld [vmem:[%s4 + $0x108] sm:$0xff]
        %v1187 = vld [vmem:[%s5] sm:$0x1]
        %v1189 = vlaneseq
        %v1190 = vshrl.u32 %v1189, 7
        %v1191 = vsub.s32 0, %v1190
        %v1192 = vrot.slane %v1187, %v1191
        %vm1194 = vcmask 130048
        %v1196 = vsel %vm1194, %v1137, 0
        %v1199 = vsel %vm1194, %v1138, 0
        %v1202 = vsel %vm1194, %v1139, 0
        %v1205 = vsel %vm1194, %v1140, 0
        %v1208 = vsel %vm1194, %v1141, 0
        %v1211 = vsel %vm1194, %v1142, 0
        %v1214 = vsel %vm1194, %v1143, 0
        %v1217 = vsel %vm1194, %v1144, 0
        %v1220 = vsel %vm1194, %v1145, 0
        %v1223 = vsel %vm1194, %v1146, 0
        %v1226 = vsel %vm1194, %v1147, 0
        %v1229 = vsel %vm1194, %v1148, 0
        %v1232 = vsel %vm1194, %v1149, 0
        %v1235 = vsel %vm1194, %v1150, 0
        %v1238 = vsel %vm1194, %v1151, 0
        %v1241 = vsel %vm1194, %v1152, 0
        %1243 = vmatprep.subr.mxu0 0.0
        %1244 = vmatpush1.msra.mxu0 %v1153
        %1245 = vmatprep.subr.mxu0 0.0
        %1246 = vmatpush1.msra.mxu0 %v1154
        %1247 = vmatprep.subr.mxu0 0.0
        %1248 = vmatpush1.msra.mxu0 %v1155
        %1249 = vmatprep.subr.mxu0 0.0
        %1250 = vmatpush1.msra.mxu0 %v1156
        %1251 = vmatprep.subr.mxu0 0.0
        %1252 = vmatpush1.msra.mxu0 %v1157
        %1253 = vmatprep.subr.mxu0 0.0
        %1254 = vmatpush1.msra.mxu0 %v1158
        %1255 = vmatprep.subr.mxu0 0.0
        %1256 = vmatpush1.msra.mxu0 %v1159
        %1257 = vmatprep.subr.mxu0 0.0
        %1258 = vmatpush1.msra.mxu0 %v1160
        %1259 = vmatprep.subr.mxu0 0.0
        %1260 = vmatpush1.msra.mxu0 %v1161
        %1261 = vmatprep.subr.mxu0 0.0
        %1262 = vmatpush1.msra.mxu0 %v1162
        %1263 = vmatprep.subr.mxu0 0.0
        %1264 = vmatpush1.msra.mxu0 %v1163
        %1265 = vmatprep.subr.mxu0 0.0
        %1266 = vmatpush1.msra.mxu0 %v1164
        %1267 = vmatprep.subr.mxu0 0.0
        %1268 = vmatpush1.msra.mxu0 %v1165
        %1269 = vmatprep.subr.mxu0 0.0
        %1270 = vmatpush1.msra.mxu0 %v1166
        %1271 = vmatprep.subr.mxu0 0.0
        %1272 = vmatpush1.msra.mxu0 %v1167
        %1273 = vmatprep.subr.mxu0 0.0
        %1274 = vmatpush1.msra.mxu0 %v1168
        %1275 = vmatprep.subr.mxu0 0.0
        %1276 = vmatpush1.msra.mxu0 %v1169
        %1277 = vmatprep.subr.mxu0 0.0
        %1278 = vmatpush1.msra.mxu0 %v1170
        %1279 = vmatprep.subr.mxu0 0.0
        %1280 = vmatpush1.msra.mxu0 %v1171
        %1281 = vmatprep.subr.mxu0 0.0
        %1282 = vmatpush1.msra.mxu0 %v1172
        %1283 = vmatprep.subr.mxu0 0.0
        %1284 = vmatpush1.msra.mxu0 %v1173
        %1285 = vmatprep.subr.mxu0 0.0
        %1286 = vmatpush1.msra.mxu0 %v1174
        %1287 = vmatprep.subr.mxu0 0.0
        %1288 = vmatpush1.msra.mxu0 %v1175
        %1289 = vmatprep.subr.mxu0 0.0
        %1290 = vmatpush1.msra.mxu0 %v1176
        %1291 = vmatprep.subr.mxu0 0.0
        %1292 = vmatpush1.msra.mxu0 %v1177
        %1293 = vmatprep.subr.mxu0 0.0
        %1294 = vmatpush1.msra.mxu0 %v1178
        %1295 = vmatprep.subr.mxu0 0.0
        %1296 = vmatpush1.msra.mxu0 %v1179
        %1297 = vmatprep.subr.mxu0 0.0
        %1298 = vmatpush1.msra.mxu0 %v1180
        %1299 = vmatprep.subr.mxu0 0.0
        %1300 = vmatpush1.msra.mxu0 %v1181
        %1301 = vmatprep.subr.mxu0 0.0
        %1302 = vmatpush1.msra.mxu0 %v1182
        %1303 = vmatprep.subr.mxu0 0.0
        %1304 = vmatpush1.msra.mxu0 %v1183
        %1305 = vmatprep.subr.mxu0 0.0
        %1306 = vmatpush1.msra.mxu0 %v1184
        %1307 = vmatprep.mubr.f32.mxu0 %v1121
        %1308 = vmatmul.mubr.f32.gmra.mrb[0].mxu0 %v1009
        %v1309 = vpop.f32.mrb[0].mxu0
        %v1310 = vadd.f32 %v1192, %v1309
        %v1311 = vpop.f32.mrb[0].mxu0
        %1312 = vmatprep.mubr.f32.mxu0 %v1122
        %1313 = vmatmul.mubr.f32.gmra.mrb[0].mxu0 %v1010
        %v1314 = vpop.f32.mrb[0].mxu0
        %v1315 = vadd.f32 %v1192, %v1314
        %v1316 = vpop.f32.mrb[0].mxu0
        %1317 = vmatprep.mubr.f32.mxu0 %v1123
        %1318 = vmatmul.mubr.f32.gmra.mrb[0].mxu0 %v1011
        %v1319 = vpop.f32.mrb[0].mxu0
        %v1320 = vadd.f32 %v1192, %v1319
        %v1321 = vpop.f32.mrb[0].mxu0
        %1322 = vmatprep.mubr.f32.mxu0 %v1124
        %1323 = vmatmul.mubr.f32.gmra.mrb[0].mxu0 %v1012
        %v1324 = vpop.f32.mrb[0].mxu0
        %v1325 = vadd.f32 %v1192, %v1324
        %v1326 = vpop.f32.mrb[0].mxu0
        %1327 = vmatprep.mubr.f32.mxu0 %v1125
        %1328 = vmatmul.mubr.f32.gmra.mrb[0].mxu0 %v1013
        %v1329 = vpop.f32.mrb[0].mxu0
        %v1330 = vadd.f32 %v1192, %v1329
        %v1331 = vpop.f32.mrb[0].mxu0
        %1332 = vmatprep.mubr.f32.mxu0 %v1126
        %1333 = vmatmul.mubr.f32.gmra.mrb[0].mxu0 %v1014
        %v1334 = vpop.f32.mrb[0].mxu0
        %v1335 = vadd.f32 %v1192, %v1334
        %v1336 = vpop.f32.mrb[0].mxu0
        %1337 = vmatprep.mubr.f32.mxu0 %v1127
        %1338 = vmatmul.mubr.f32.gmra.mrb[0].mxu0 %v1015
        %v1339 = vpop.f32.mrb[0].mxu0
        %v1340 = vadd.f32 %v1192, %v1339
        %v1341 = vpop.f32.mrb[0].mxu0
        %1342 = vmatprep.mubr.f32.mxu0 %v1128
        %1343 = vmatmul.mubr.f32.gmra.mrb[0].mxu0 %v1016
        %v1344 = vpop.f32.mrb[0].mxu0
        %v1345 = vadd.f32 %v1192, %v1344
        %v1346 = vpop.f32.mrb[0].mxu0
        %1347 = vmatprep.mubr.f32.mxu0 %v1129
        %1348 = vmatmul.mubr.f32.gmra.mrb[0].mxu0 %v1017
        %v1349 = vpop.f32.mrb[0].mxu0
        %v1350 = vadd.f32 %v1192, %v1349
        %v1351 = vpop.f32.mrb[0].mxu0
        %1352 = vmatprep.mubr.f32.mxu0 %v1130
        %1353 = vmatmul.mubr.f32.gmra.mrb[0].mxu0 %v1018
        %v1354 = vpop.f32.mrb[0].mxu0
        %v1355 = vadd.f32 %v1192, %v1354
        %v1356 = vpop.f32.mrb[0].mxu0
        %1357 = vmatprep.mubr.f32.mxu0 %v1131
        %1358 = vmatmul.mubr.f32.gmra.mrb[0].mxu0 %v1019
        %v1359 = vpop.f32.mrb[0].mxu0
        %v1360 = vadd.f32 %v1192, %v1359
        %v1361 = vpop.f32.mrb[0].mxu0
        %1362 = vmatprep.mubr.f32.mxu0 %v1132
        %1363 = vmatmul.mubr.f32.gmra.mrb[0].mxu0 %v1020
        %v1364 = vpop.f32.mrb[0].mxu0
        %v1365 = vadd.f32 %v1192, %v1364
        %v1366 = vpop.f32.mrb[0].mxu0
        %1367 = vmatprep.mubr.f32.mxu0 %v1133
        %1368 = vmatmul.mubr.f32.gmra.mrb[0].mxu0 %v1021
        %v1369 = vpop.f32.mrb[0].mxu0
        %v1370 = vadd.f32 %v1192, %v1369
        %v1371 = vpop.f32.mrb[0].mxu0
        %1372 = vmatprep.mubr.f32.mxu0 %v1134
        %1373 = vmatmul.mubr.f32.gmra.mrb[0].mxu0 %v1022
        %v1374 = vpop.f32.mrb[0].mxu0
        %v1375 = vadd.f32 %v1192, %v1374
        %v1376 = vpop.f32.mrb[0].mxu0
        %1377 = vmatprep.mubr.f32.mxu0 %v1135
        %1378 = vmatmul.mubr.f32.gmra.mrb[0].mxu0 %v1023
        %v1379 = vpop.f32.mrb[0].mxu0
        %v1380 = vadd.f32 %v1192, %v1379
        %v1381 = vpop.f32.mrb[0].mxu0
        %1382 = vmatprep.mubr.f32.mxu0 %v1136
        %1383 = vmatmul.mubr.f32.gmra.mrb[0].mxu0 %v1024
        %v1384 = vpop.f32.mrb[0].mxu0
        %v1385 = vadd.f32 %v1192, %v1384
        %v1386 = vpop.f32.mrb[0].mxu0
        %1387 = vdwg.mxu0
        %1388 = vmatprep.subr.mxu0 0.0
        %1389 = vmatpush1.msra.mxu0 %v1185
        %1390 = vmatprep.subr.mxu0 0.0
        %1391 = vmatpush1.msra.mxu0 %v1186
        %1392 = vmatprep.subr.mxu0 0.0
        %1393 = vmatpush1.msra.mxu0 0.0
        %1394 = vmatprep.subr.mxu0 0.0
        %1395 = vmatpush1.msra.mxu0 0.0
        %1396 = vmatprep.subr.mxu0 0.0
        %1397 = vmatpush1.msra.mxu0 0.0
        %1398 = vmatprep.subr.mxu0 0.0
        %1399 = vmatpush1.msra.mxu0 0.0
        %1400 = vmatprep.subr.mxu0 0.0
        %1401 = vmatpush1.msra.mxu0 0.0
        %1402 = vmatprep.subr.mxu0 0.0
        %1403 = vmatpush1.msra.mxu0 0.0
        %1404 = vmatprep.subr.mxu0 0.0
        %1405 = vmatpush1.msra.mxu0 0.0
        %1406 = vmatprep.subr.mxu0 0.0
        %1407 = vmatpush1.msra.mxu0 0.0
        %1408 = vmatprep.subr.mxu0 0.0
        %1409 = vmatpush1.msra.mxu0 0.0
        %1410 = vmatprep.subr.mxu0 0.0
        %1411 = vmatpush1.msra.mxu0 0.0
        %1412 = vmatprep.subr.mxu0 0.0
        %1413 = vmatpush1.msra.mxu0 0.0
        %1414 = vmatprep.subr.mxu0 0.0
        %1415 = vmatpush1.msra.mxu0 0.0
        %1416 = vmatprep.subr.mxu0 0.0
        %1417 = vmatpush1.msra.mxu0 0.0
        %1418 = vmatprep.subr.mxu0 0.0
        %1419 = vmatpush1.msra.mxu0 0.0
        %1420 = vmatprep.subr.mxu0 0.0
        %1421 = vmatpush1.msra.mxu0 0.0
        %1422 = vmatprep.subr.mxu0 0.0
        %1423 = vmatpush1.msra.mxu0 0.0
        %1424 = vmatprep.subr.mxu0 0.0
        %1425 = vmatpush1.msra.mxu0 0.0
        %1426 = vmatprep.subr.mxu0 0.0
        %1427 = vmatpush1.msra.mxu0 0.0
        %1428 = vmatprep.subr.mxu0 0.0
        %1429 = vmatpush1.msra.mxu0 0.0
        %1430 = vmatprep.subr.mxu0 0.0
        %1431 = vmatpush1.msra.mxu0 0.0
        %1432 = vmatprep.subr.mxu0 0.0
        %1433 = vmatpush1.msra.mxu0 0.0
        %1434 = vmatprep.subr.mxu0 0.0
        %1435 = vmatpush1.msra.mxu0 0.0
        %1436 = vmatprep.subr.mxu0 0.0
        %1437 = vmatpush1.msra.mxu0 0.0
        %1438 = vmatprep.subr.mxu0 0.0
        %1439 = vmatpush1.msra.mxu0 0.0
        %1440 = vmatprep.subr.mxu0 0.0
        %1441 = vmatpush1.msra.mxu0 0.0
        %1442 = vmatprep.subr.mxu0 0.0
        %1443 = vmatpush1.msra.mxu0 0.0
        %1444 = vmatprep.subr.mxu0 0.0
        %1445 = vmatpush1.msra.mxu0 0.0
        %1446 = vmatprep.subr.mxu0 0.0
        %1447 = vmatpush1.msra.mxu0 0.0
        %1448 = vmatprep.subr.mxu0 0.0
        %1449 = vmatpush1.msra.mxu0 0.0
        %1450 = vmatprep.subr.mxu0 0.0
        %1451 = vmatpush1.msra.mxu0 0.0
        %1452 = vmatprep.mubr.f32.mxu0 0.0
        %1453 = vmatmul.mubr.f32.gmra.mrb[0].mxu0 %v1196
        %v1454 = vpop.f32.mrb[0].mxu0
        %v1455 = vadd.f32 %v1310, %v1454
        %v1456 = vpop.f32.mrb[0].mxu0
        %1457 = vmatprep.mubr.f32.mxu0 0.0
        %1458 = vmatmul.mubr.f32.gmra.mrb[0].mxu0 %v1199
        %v1459 = vpop.f32.mrb[0].mxu0
        %v1460 = vadd.f32 %v1315, %v1459
        %v1461 = vpop.f32.mrb[0].mxu0
        %1462 = vmatprep.mubr.f32.mxu0 0.0
        %1463 = vmatmul.mubr.f32.gmra.mrb[0].mxu0 %v1202
        %v1464 = vpop.f32.mrb[0].mxu0
        %v1465 = vadd.f32 %v1320, %v1464
        %v1466 = vpop.f32.mrb[0].mxu0
        %1467 = vmatprep.mubr.f32.mxu0 0.0
        %1468 = vmatmul.mubr.f32.gmra.mrb[0].mxu0 %v1205
        %v1469 = vpop.f32.mrb[0].mxu0
        %v1470 = vadd.f32 %v1325, %v1469
        %v1471 = vpop.f32.mrb[0].mxu0
        %1472 = vmatprep.mubr.f32.mxu0 0.0
        %1473 = vmatmul.mubr.f32.gmra.mrb[0].mxu0 %v1208
        %v1474 = vpop.f32.mrb[0].mxu0
        %v1475 = vadd.f32 %v1330, %v1474
        %v1476 = vpop.f32.mrb[0].mxu0
        %1477 = vmatprep.mubr.f32.mxu0 0.0
        %1478 = vmatmul.mubr.f32.gmra.mrb[0].mxu0 %v1211
        %v1479 = vpop.f32.mrb[0].mxu0
        %v1480 = vadd.f32 %v1335, %v1479
        %v1481 = vpop.f32.mrb[0].mxu0
        %1482 = vmatprep.mubr.f32.mxu0 0.0
        %1483 = vmatmul.mubr.f32.gmra.mrb[0].mxu0 %v1214
        %v1484 = vpop.f32.mrb[0].mxu0
        %v1485 = vadd.f32 %v1340, %v1484
        %v1486 = vpop.f32.mrb[0].mxu0
        %1487 = vmatprep.mubr.f32.mxu0 0.0
        %1488 = vmatmul.mubr.f32.gmra.mrb[0].mxu0 %v1217
        %v1489 = vpop.f32.mrb[0].mxu0
        %v1490 = vadd.f32 %v1345, %v1489
        %v1491 = vpop.f32.mrb[0].mxu0
        %1492 = vmatprep.mubr.f32.mxu0 0.0
        %1493 = vmatmul.mubr.f32.gmra.mrb[0].mxu0 %v1220
        %v1494 = vpop.f32.mrb[0].mxu0
        %v1495 = vadd.f32 %v1350, %v1494
        %v1496 = vpop.f32.mrb[0].mxu0
        %1497 = vmatprep.mubr.f32.mxu0 0.0
        %1498 = vmatmul.mubr.f32.gmra.mrb[0].mxu0 %v1223
        %v1499 = vpop.f32.mrb[0].mxu0
        %v1500 = vadd.f32 %v1355, %v1499
        %v1501 = vpop.f32.mrb[0].mxu0
        %1502 = vmatprep.mubr.f32.mxu0 0.0
        %1503 = vmatmul.mubr.f32.gmra.mrb[0].mxu0 %v1226
        %v1504 = vpop.f32.mrb[0].mxu0
        %v1505 = vadd.f32 %v1360, %v1504
        %v1506 = vpop.f32.mrb[0].mxu0
        %1507 = vmatprep.mubr.f32.mxu0 0.0
        %1508 = vmatmul.mubr.f32.gmra.mrb[0].mxu0 %v1229
        %v1509 = vpop.f32.mrb[0].mxu0
        %v1510 = vadd.f32 %v1365, %v1509
        %v1511 = vpop.f32.mrb[0].mxu0
        %1512 = vmatprep.mubr.f32.mxu0 0.0
        %1513 = vmatmul.mubr.f32.gmra.mrb[0].mxu0 %v1232
        %v1514 = vpop.f32.mrb[0].mxu0
        %v1515 = vadd.f32 %v1370, %v1514
        %v1516 = vpop.f32.mrb[0].mxu0
        %1517 = vmatprep.mubr.f32.mxu0 0.0
        %1518 = vmatmul.mubr.f32.gmra.mrb[0].mxu0 %v1235
        %v1519 = vpop.f32.mrb[0].mxu0
        %v1520 = vadd.f32 %v1375, %v1519
        %v1521 = vpop.f32.mrb[0].mxu0
        %1522 = vmatprep.mubr.f32.mxu0 0.0
        %1523 = vmatmul.mubr.f32.gmra.mrb[0].mxu0 %v1238
        %v1524 = vpop.f32.mrb[0].mxu0
        %v1525 = vadd.f32 %v1380, %v1524
        %v1526 = vpop.f32.mrb[0].mxu0
        %1527 = vmatprep.mubr.f32.mxu0 0.0
        %1528 = vmatmul.mubr.f32.gmra.mrb[0].mxu0 %v1241
        %v1529 = vpop.f32.mrb[0].mxu0
        %v1530 = vadd.f32 %v1385, %v1529
        %v1531 = vpop.f32.mrb[0].mxu0
        %1532 = vdwg.mxu0
        %1533 = vst [vmem:[%s293] sm:$0xff] %v1455
        %1534 = vst [vmem:[%s293 + $0x8] sm:$0xff] %v1460
        %1535 = vst [vmem:[%s293 + $0x10] sm:$0xff] %v1465
        %1536 = vst [vmem:[%s293 + $0x18] sm:$0xff] %v1470
        %1537 = vst [vmem:[%s293 + $0x20] sm:$0xff] %v1475
        %1538 = vst [vmem:[%s293 + $0x28] sm:$0xff] %v1480
        %1539 = vst [vmem:[%s293 + $0x30] sm:$0xff] %v1485
        %1540 = vst [vmem:[%s293 + $0x38] sm:$0xff] %v1490
        %1541 = vst [vmem:[%s293 + $0x40] sm:$0xff] %v1495
        %1542 = vst [vmem:[%s293 + $0x48] sm:$0xff] %v1500
        %1543 = vst [vmem:[%s293 + $0x50] sm:$0xff] %v1505
        %1544 = vst [vmem:[%s293 + $0x58] sm:$0xff] %v1510
        %1545 = vst [vmem:[%s293 + $0x60] sm:$0xff] %v1515
        %1546 = vst [vmem:[%s293 + $0x68] sm:$0xff] %v1520
        %1547 = vst [vmem:[%s293 + $0x70] sm:$0xff] %v1525
        %1548 = vst [vmem:[%s293 + $0x78] sm:$0xff] %v1530
        %s1549 = sand.u32 %s174, 1
        %s1550 = scalar_lea.sflag [#allocation3], %s1549
        %s1551 = sand.u32 %s174, 1
        %s1552 = smul.addr %s1551, 128
        %s1553 = scalar_lea.vmem [#allocation2], %s1552
        // Predicated region
        $region45: #{tpu_custom_call.1} parent=43 // pred_check
          %p1554 = pneg %p184
        $region46: #{tpu_custom_call.1} parent=43 // pred_check_branch
          %1556 = sbr.rel (%p1554) target = $region48
        $region47: #{tpu_custom_call.1} parent=43 // pred_region
          %s1557 = smul.u32 16, %s20
          %s1559 = ssub.s32 2048, 2048
          %1560 = vsyncadd %s1550, %s1559
          %s1561 = smul.addr %s1557, 128
          %s1562 = scalar_lea.hbm %s6, %s1561
          %s1563 = sshll.u32 %s1553, 4
          %s1564 = int_to_ptr.vmem [resolvable:$true] %s1563
          %1569 = dma.vmem_to_hbm [thread:$0]  %s1564, 2048, %s1562, %s1550, 128, 128, 8
        $region48: #{tpu_custom_call.1} parent=43 // pred_fallthru
          _
      $region44: #{tpu_custom_call.1} parent=5 // pred_fallthru
        _
      %p1570 = scmp.le.s32.totalorder 2, %s15
      // Predicated region
      $region49: #{tpu_custom_call.1} parent=5 // pred_check
        %p1571 = pneg %p1570
      $region50: #{tpu_custom_call.1} parent=5 // pred_check_branch
        %1573 = sbr.rel (%p1571) target = $region52
      $region51: #{tpu_custom_call.1} parent=5 // pred_region
        %s1574 = ssub.s32 %s15, 2
        // Predicated region
        $region53: #{tpu_custom_call.1} parent=51 // pred_check
          %p1575 = pneg %p190
        $region54: #{tpu_custom_call.1} parent=51 // pred_check_branch
          %1577 = sbr.rel (%p1575) target = $region56
        $region55: #{tpu_custom_call.1} parent=51 // pred_region
          %s1578 = sand.u32 %s175, 1
          %s1579 = scalar_lea.sflag [#allocation3], %s1578
          %s1580 = sand.u32 %s175, 1
          %s1581 = smul.addr %s1580, 128
          %s1582 = scalar_lea.vmem [#allocation2], %s1581
          %1583 = dma.done %s1579, 2048
        $region56: #{tpu_custom_call.1} parent=51 // pred_fallthru
          _
      $region52: #{tpu_custom_call.1} parent=5 // pred_fallthru
        _
    $region6: #{tpu_custom_call.1} parent=1 // loop_footer
      %s19 = sadd.s32 1, %s15
    $region7: #{tpu_custom_call.1} parent=1 // loop_footer_branch
      %14 = sbr.rel target = $region3
    $region8: #{tpu_custom_call.1} parent=1 // loop_exit
      _
    %1584 = vsyncpa [#allocation3], 1
    %s1585 = scalar_lea.sflag [#allocation3], 1
    %1586 = vsyncpa %s1585, 1

</llo_original>
